<compile_context>
chip_gen: v6e
topology: v6e:2x2x1
jax: 0.10.0
libtpu: 0.0.40
codegen_flags: <defaults>
</compile_context>

<pallas_src>
import jax
import jax.numpy as jnp
import numpy as np
from jax.experimental import pallas as pl
from jax.experimental.pallas import tpu as pltpu

LN_EPS = 1e-5                      # torch.nn.LayerNorm default eps
_SQRT_HALF = 0.7071067811865476    # 1/sqrt(2)


def _layer_norm(x, gamma, beta):
    # x: (R, C); gamma/beta: (1, C). Matches torch.nn.LayerNorm (biased variance).
    mu = jnp.mean(x, axis=-1, keepdims=True)
    xc = x - mu
    var = jnp.mean(xc * xc, axis=-1, keepdims=True)
    return xc * jax.lax.rsqrt(var + LN_EPS) * gamma + beta


def _erf(x):
    # Abramowitz & Stegun 7.1.26, |err| < 1.5e-7. Uses only exp/mul/add/where so it
    # lowers cleanly in Mosaic.
    # TODO(synk): swap for jax.lax.erf once its Mosaic lowering is confirmed everywhere.
    a1, a2, a3, a4, a5 = 0.254829592, -0.284496736, 1.421413741, -1.453152027, 1.061405429
    p = 0.3275911
    ax = jnp.abs(x)
    t = 1.0 / (1.0 + p * ax)
    poly = ((((a5 * t + a4) * t + a3) * t + a2) * t + a1) * t
    y = 1.0 - poly * jnp.exp(-ax * ax)
    return jnp.where(x >= 0, y, -y)


def _gelu(x):
    # Exact (erf-based) GELU, matching torch.nn.GELU() default.
    return 0.5 * x * (1.0 + _erf(x * _SQRT_HALF))


def avg_attn_pool_kernel(
    x_ref,                  # (B, N, C)   channels-last flattened feature map
    clsq_ref,               # (1, C)      learned class query
    g1_ref, b1_ref,         # (1, C)      attn.norm LayerNorm affine
    wqT_ref, bq_ref,        # (C, C), (1, C)   q Linear   (weight pre-transposed: in x out)
    wkT_ref, bk_ref,        # (C, C), (1, C)   k half of vk Linear
    wvT_ref, bv_ref,        # (C, C), (1, C)   v half of vk Linear
    wpT_ref, bp_ref,        # (C, C), (1, C)   proj Linear
    g2_ref, b2_ref,         # (1, C)      outer LayerNorm affine
    o_ref,                  # (B, C)
):
    B, N, C = x_ref.shape
    x = x_ref[...]                                          # (B, N, C) f32

    # AdaptiveAvgPool2d(1).flatten(1) == mean over the N spatial positions.
    pooled = jnp.mean(x, axis=1)                            # (B, C)

    # attn.norm: LayerNorm over channels on every token (flatten batch into sublanes).
    xn = _layer_norm(x.reshape(B * N, C), g1_ref[...], b1_ref[...])   # (B*N, C)

    # Projections. Weights arrive pre-transposed (in, out): plain x @ W, no in-kernel .T.
    q = jnp.dot(clsq_ref[...], wqT_ref[...],
                preferred_element_type=jnp.float32) + bq_ref[...]     # (1, C)
    k = jnp.dot(xn, wkT_ref[...], preferred_element_type=jnp.float32) + bk_ref[...]
    v = jnp.dot(xn, wvT_ref[...], preferred_element_type=jnp.float32) + bv_ref[...]
    k = k.reshape(B, N, C)
    v = v.reshape(B, N, C)

    # Single-query attention: cls_q attends over the N tokens of each image (no scale,
    # exactly as the PyTorch module).
    qb = jnp.broadcast_to(q.reshape(1, 1, C), (B, 1, C))
    s = jnp.einsum("bqc,bnc->bqn", qb, k,
                   preferred_element_type=jnp.float32)                # (B, 1, N)
    s = s - jnp.max(s, axis=-1, keepdims=True)
    p = jnp.exp(s)
    p = p / jnp.sum(p, axis=-1, keepdims=True)
    a = jnp.einsum("bqn,bnc->bqc", p, v,
                   preferred_element_type=jnp.float32).reshape(B, C)  # (B, C)

    # Output projection of the attention-pooled vector.
    attn_out = jnp.dot(a, wpT_ref[...], preferred_element_type=jnp.float32) + bp_ref[...]

    # Residual with the average pool, outer LayerNorm, exact GELU.
    y = _layer_norm(pooled + attn_out, g2_ref[...], b2_ref[...])
    o_ref[...] = _gelu(y).astype(o_ref.dtype)


def avg_attn_pooling_2d_s(x, params):
    """x: (B, C, H, W). params: torch-convention tensors (Linear weights are (out, in))."""
    Bdim, C, H, W = x.shape
    N = H * W

    # Host-side layout plumbing: flatten spatial, put channels on the lane axis.
    x_bnc = jnp.transpose(x.reshape(Bdim, C, N), (0, 2, 1))           # (B, N, C)

    def row(vec):                                                     # (C,) -> (1, C)
        return vec.reshape(1, -1)

    wvk, bvk = params["vk_w"], params["vk_b"]                         # (2C, C), (2C,)
    args = (
        x_bnc,
        params["cls_q"],                                              # (1, C)
        row(params["ln1_g"]), row(params["ln1_b"]),
        params["q_w"].T, row(params["q_b"]),                          # pre-transposed
        wvk[:C, :].T, row(bvk[:C]),                                   # k half
        wvk[C:, :].T, row(bvk[C:]),                                   # v half
        params["proj_w"].T, row(params["proj_b"]),
        row(params["ln2_g"]), row(params["ln2_b"]),
    )

    # Whole batch + all weights fit in a few tens of KB of VMEM -> one resident
    # program, no grid, no per-step pipelining overhead.
    return pl.pallas_call(
        avg_attn_pool_kernel,
        out_shape=jax.ShapeDtypeStruct((Bdim, C), x.dtype),
        in_specs=[pl.BlockSpec(memory_space=pltpu.MemorySpace.VMEM)] * len(args),
        out_specs=pl.BlockSpec(memory_space=pltpu.MemorySpace.VMEM),
    )(*args)


def avg_attn_pooling_2d_s_reference(x, params):
    """Pure-JAX mirror of the PyTorch forward."""
    Bdim, C, H, W = x.shape
    xf = jnp.transpose(x.reshape(Bdim, C, H * W), (0, 2, 1))          # (B, N, C)

    mu = jnp.mean(xf, axis=-1, keepdims=True)
    xc = xf - mu
    var = jnp.mean(xc * xc, axis=-1, keepdims=True)
    xn = xc * jax.lax.rsqrt(var + LN_EPS) * params["ln1_g"] + params["ln1_b"]

    q = params["cls_q"] @ params["q_w"].T + params["q_b"]             # (1, C)
    kv = xn @ params["vk_w"].T + params["vk_b"]                       # (B, N, 2C)
    k, v = kv[..., :C], kv[..., C:]                                   # chunk order: k first

    s = jnp.einsum("qc,bnc->bqn", q, k)                               # (B, 1, N), no scale
    attn = jax.nn.softmax(s, axis=-1)
    a = jnp.einsum("bqn,bnc->bqc", attn, v).reshape(Bdim, C)
    attn_out = a @ params["proj_w"].T + params["proj_b"]

    pooled = jnp.mean(x, axis=(2, 3))                                 # AdaptiveAvgPool2d(1)
    y = pooled + attn_out
    mu2 = jnp.mean(y, axis=-1, keepdims=True)
    yc = y - mu2
    var2 = jnp.mean(yc * yc, axis=-1, keepdims=True)
    y = yc * jax.lax.rsqrt(var2 + LN_EPS) * params["ln2_g"] + params["ln2_b"]
    return jax.nn.gelu(y, approximate=False)


if __name__ == "__main__":
    key = jax.random.PRNGKey(0)
    ks = jax.random.split(key, 12)

    Bdim, C, H, W = 2, 32, 8, 8
    x = jax.random.normal(ks[0], (Bdim, C, H, W), dtype=jnp.float32)

    # Deterministic params (PyTorch conventions: Linear weight (out, in)). Biases and
    # LayerNorm affines are made non-trivial so every term of the forward is exercised.
    params = {
        "cls_q":  0.02 * jax.random.normal(ks[1], (1, C), dtype=jnp.float32),
        "ln1_g":  1.0 + 0.1 * jax.random.normal(ks[2], (C,), dtype=jnp.float32),
        "ln1_b":  0.05 * jax.random.normal(ks[3], (C,), dtype=jnp.float32),
        "q_w":    0.02 * jax.random.normal(ks[4], (C, C), dtype=jnp.float32),
        "q_b":    0.02 * jax.random.normal(ks[5], (C,), dtype=jnp.float32),
        "vk_w":   0.02 * jax.random.normal(ks[6], (2 * C, C), dtype=jnp.float32),
        "vk_b":   0.02 * jax.random.normal(ks[7], (2 * C,), dtype=jnp.float32),
        "proj_w": 0.02 * jax.random.normal(ks[8], (C, C), dtype=jnp.float32),
        "proj_b": 0.02 * jax.random.normal(ks[9], (C,), dtype=jnp.float32),
        "ln2_g":  1.0 + 0.1 * jax.random.normal(ks[10], (C,), dtype=jnp.float32),
        "ln2_b":  0.05 * jax.random.normal(ks[11], (C,), dtype=jnp.float32),
    }

    out = avg_attn_pooling_2d_s(x, params)
    out = jax.block_until_ready(out)

    ref = avg_attn_pooling_2d_s_reference(x, params)
    np.testing.assert_allclose(np.asarray(out), np.asarray(ref), rtol=1e-4, atol=1e-4)

    print("KERNEL_OK")
</pallas_src>

<mosaic_0001>
module attributes {stable_mosaic.version = 11 : i64} {
  func.func @avg_attn_pool_kernel(%arg0: memref<2x64x32xf32, #tpu.memory_space<vmem>>, %arg1: memref<1x32xf32, #tpu.memory_space<vmem>>, %arg2: memref<1x32xf32, #tpu.memory_space<vmem>>, %arg3: memref<1x32xf32, #tpu.memory_space<vmem>>, %arg4: memref<32x32xf32, #tpu.memory_space<vmem>>, %arg5: memref<1x32xf32, #tpu.memory_space<vmem>>, %arg6: memref<32x32xf32, #tpu.memory_space<vmem>>, %arg7: memref<1x32xf32, #tpu.memory_space<vmem>>, %arg8: memref<32x32xf32, #tpu.memory_space<vmem>>, %arg9: memref<1x32xf32, #tpu.memory_space<vmem>>, %arg10: memref<32x32xf32, #tpu.memory_space<vmem>>, %arg11: memref<1x32xf32, #tpu.memory_space<vmem>>, %arg12: memref<1x32xf32, #tpu.memory_space<vmem>>, %arg13: memref<1x32xf32, #tpu.memory_space<vmem>>, %arg14: memref<2x32xf32, #tpu.memory_space<vmem>>) attributes {dimension_semantics = [], scalar_prefetch = 0 : i64, scratch_operands = 0 : i64, tpu.core_type = #tpu.core_type<tc>} {
    %c0 = arith.constant 0 : index
    %c0_0 = arith.constant 0 : index
    %c0_1 = arith.constant 0 : index
    %0 = vector.load %arg0[%c0, %c0_0, %c0_1] : memref<2x64x32xf32, #tpu.memory_space<vmem>>, vector<2x64x32xf32>
    %cst = arith.constant dense<0.000000e+00> : vector<2x32xf32>
    %1 = vector.multi_reduction <add>, %0, %cst [1] : vector<2x64x32xf32> to vector<2x32xf32>
    %cst_2 = arith.constant 6.400000e+01 : f32
    %2 = vector.broadcast %cst_2 : f32 to vector<2x32xf32>
    %3 = arith.divf %1, %2 : vector<2x32xf32>
    %4 = vector.shape_cast %0 : vector<2x64x32xf32> to vector<128x32xf32>
    %c0_3 = arith.constant 0 : index
    %c0_4 = arith.constant 0 : index
    %5 = vector.load %arg2[%c0_3, %c0_4] : memref<1x32xf32, #tpu.memory_space<vmem>>, vector<1x32xf32>
    %c0_5 = arith.constant 0 : index
    %c0_6 = arith.constant 0 : index
    %6 = vector.load %arg3[%c0_5, %c0_6] : memref<1x32xf32, #tpu.memory_space<vmem>>, vector<1x32xf32>
    %cst_7 = arith.constant dense<0.000000e+00> : vector<128xf32>
    %7 = vector.multi_reduction <add>, %4, %cst_7 [1] : vector<128x32xf32> to vector<128xf32>
    %8 = vector.shape_cast %7 : vector<128xf32> to vector<128x1xf32>
    %cst_8 = arith.constant 3.200000e+01 : f32
    %9 = vector.broadcast %cst_8 : f32 to vector<128x1xf32>
    %10 = arith.divf %8, %9 : vector<128x1xf32>
    %11 = vector.broadcast %10 : vector<128x1xf32> to vector<128x32xf32>
    %12 = arith.subf %4, %11 : vector<128x32xf32>
    %13 = arith.mulf %12, %12 : vector<128x32xf32>
    %cst_9 = arith.constant dense<0.000000e+00> : vector<128xf32>
    %14 = vector.multi_reduction <add>, %13, %cst_9 [1] : vector<128x32xf32> to vector<128xf32>
    %15 = vector.shape_cast %14 : vector<128xf32> to vector<128x1xf32>
    %cst_10 = arith.constant 3.200000e+01 : f32
    %16 = vector.broadcast %cst_10 : f32 to vector<128x1xf32>
    %17 = arith.divf %15, %16 : vector<128x1xf32>
    %cst_11 = arith.constant 9.99999974E-6 : f32
    %18 = vector.broadcast %cst_11 : f32 to vector<128x1xf32>
    %19 = arith.addf %17, %18 : vector<128x1xf32>
    %20 = math.rsqrt %19 : vector<128x1xf32>
    %21 = vector.broadcast %20 : vector<128x1xf32> to vector<128x32xf32>
    %22 = arith.mulf %12, %21 : vector<128x32xf32>
    %23 = vector.broadcast %5 : vector<1x32xf32> to vector<128x32xf32>
    %24 = arith.mulf %22, %23 : vector<128x32xf32>
    %25 = vector.broadcast %6 : vector<1x32xf32> to vector<128x32xf32>
    %26 = arith.addf %24, %25 : vector<128x32xf32>
    %c0_12 = arith.constant 0 : index
    %c0_13 = arith.constant 0 : index
    %27 = vector.load %arg1[%c0_12, %c0_13] : memref<1x32xf32, #tpu.memory_space<vmem>>, vector<1x32xf32>
    %c0_14 = arith.constant 0 : index
    %c0_15 = arith.constant 0 : index
    %28 = vector.load %arg4[%c0_14, %c0_15] : memref<32x32xf32, #tpu.memory_space<vmem>>, vector<32x32xf32>
    %cst_16 = arith.constant dense<0.000000e+00> : vector<1x32xf32>
    %29 = tpu.matmul %27, %28, %cst_16 {dimension_numbers = #tpu.dot_dimension_numbers<[1], [0], [0], [1], [0, 0, 1, 1], [], []>} : vector<1x32xf32>, vector<32x32xf32>, vector<1x32xf32> -> vector<1x32xf32>
    %c0_17 = arith.constant 0 : index
    %c0_18 = arith.constant 0 : index
    %30 = vector.load %arg5[%c0_17, %c0_18] : memref<1x32xf32, #tpu.memory_space<vmem>>, vector<1x32xf32>
    %31 = arith.addf %29, %30 : vector<1x32xf32>
    %c0_19 = arith.constant 0 : index
    %c0_20 = arith.constant 0 : index
    %32 = vector.load %arg6[%c0_19, %c0_20] : memref<32x32xf32, #tpu.memory_space<vmem>>, vector<32x32xf32>
    %cst_21 = arith.constant dense<0.000000e+00> : vector<128x32xf32>
    %33 = tpu.matmul %26, %32, %cst_21 {dimension_numbers = #tpu.dot_dimension_numbers<[1], [0], [0], [1], [0, 0, 1, 1], [], []>} : vector<128x32xf32>, vector<32x32xf32>, vector<128x32xf32> -> vector<128x32xf32>
    %c0_22 = arith.constant 0 : index
    %c0_23 = arith.constant 0 : index
    %34 = vector.load %arg7[%c0_22, %c0_23] : memref<1x32xf32, #tpu.memory_space<vmem>>, vector<1x32xf32>
    %35 = vector.broadcast %34 : vector<1x32xf32> to vector<128x32xf32>
    %36 = arith.addf %33, %35 : vector<128x32xf32>
    %c0_24 = arith.constant 0 : index
    %c0_25 = arith.constant 0 : index
    %37 = vector.load %arg8[%c0_24, %c0_25] : memref<32x32xf32, #tpu.memory_space<vmem>>, vector<32x32xf32>
    %cst_26 = arith.constant dense<0.000000e+00> : vector<128x32xf32>
    %38 = tpu.matmul %26, %37, %cst_26 {dimension_numbers = #tpu.dot_dimension_numbers<[1], [0], [0], [1], [0, 0, 1, 1], [], []>} : vector<128x32xf32>, vector<32x32xf32>, vector<128x32xf32> -> vector<128x32xf32>
    %c0_27 = arith.constant 0 : index
    %c0_28 = arith.constant 0 : index
    %39 = vector.load %arg9[%c0_27, %c0_28] : memref<1x32xf32, #tpu.memory_space<vmem>>, vector<1x32xf32>
    %40 = vector.broadcast %39 : vector<1x32xf32> to vector<128x32xf32>
    %41 = arith.addf %38, %40 : vector<128x32xf32>
    %42 = vector.shape_cast %36 : vector<128x32xf32> to vector<2x64x32xf32>
    %43 = vector.shape_cast %41 : vector<128x32xf32> to vector<2x64x32xf32>
    %44 = vector.shape_cast %31 : vector<1x32xf32> to vector<1x1x32xf32>
    %45 = vector.shape_cast %44 : vector<1x1x32xf32> to vector<1x1x32xf32>
    %46 = vector.broadcast %45 : vector<1x1x32xf32> to vector<2x1x32xf32>
    "tpu.trace_start"() <{level = 10 : i32, message = "bqc,bnc->bqn"}> : () -> ()
    %cst_29 = arith.constant dense<0.000000e+00> : vector<2x1x64xf32>
    %47 = tpu.matmul %46, %42, %cst_29 {dimension_numbers = #tpu.dot_dimension_numbers<[2], [2], [1], [1], [0, 0, 0, 1, 1, 1], [0], [0]>} : vector<2x1x32xf32>, vector<2x64x32xf32>, vector<2x1x64xf32> -> vector<2x1x64xf32>
    "tpu.trace_stop"() : () -> ()
    %cst_30 = arith.constant dense<0xFF800000> : vector<2x1xf32>
    %48 = vector.multi_reduction <maximumf>, %47, %cst_30 [2] : vector<2x1x64xf32> to vector<2x1xf32>
    %49 = vector.shape_cast %48 : vector<2x1xf32> to vector<2x1x1xf32>
    %50 = vector.broadcast %49 : vector<2x1x1xf32> to vector<2x1x64xf32>
    %51 = arith.subf %47, %50 : vector<2x1x64xf32>
    %52 = math.exp %51 : vector<2x1x64xf32>
    %cst_31 = arith.constant dense<0.000000e+00> : vector<2x1xf32>
    %53 = vector.multi_reduction <add>, %52, %cst_31 [2] : vector<2x1x64xf32> to vector<2x1xf32>
    %54 = vector.shape_cast %53 : vector<2x1xf32> to vector<2x1x1xf32>
    %55 = vector.broadcast %54 : vector<2x1x1xf32> to vector<2x1x64xf32>
    %56 = arith.divf %52, %55 : vector<2x1x64xf32>
    "tpu.trace_start"() <{level = 10 : i32, message = "bqn,bnc->bqc"}> : () -> ()
    %cst_32 = arith.constant dense<0.000000e+00> : vector<2x1x32xf32>
    %57 = tpu.matmul %56, %43, %cst_32 {dimension_numbers = #tpu.dot_dimension_numbers<[2], [1], [1], [2], [0, 0, 0, 1, 1, 2], [0], [0]>} : vector<2x1x64xf32>, vector<2x64x32xf32>, vector<2x1x32xf32> -> vector<2x1x32xf32>
    "tpu.trace_stop"() : () -> ()
    %58 = vector.shape_cast %57 : vector<2x1x32xf32> to vector<2x32xf32>
    %c0_33 = arith.constant 0 : index
    %c0_34 = arith.constant 0 : index
    %59 = vector.load %arg10[%c0_33, %c0_34] : memref<32x32xf32, #tpu.memory_space<vmem>>, vector<32x32xf32>
    %cst_35 = arith.constant dense<0.000000e+00> : vector<2x32xf32>
    %60 = tpu.matmul %58, %59, %cst_35 {dimension_numbers = #tpu.dot_dimension_numbers<[1], [0], [0], [1], [0, 0, 1, 1], [], []>} : vector<2x32xf32>, vector<32x32xf32>, vector<2x32xf32> -> vector<2x32xf32>
    %c0_36 = arith.constant 0 : index
    %c0_37 = arith.constant 0 : index
    %61 = vector.load %arg11[%c0_36, %c0_37] : memref<1x32xf32, #tpu.memory_space<vmem>>, vector<1x32xf32>
    %62 = vector.broadcast %61 : vector<1x32xf32> to vector<2x32xf32>
    %63 = arith.addf %60, %62 : vector<2x32xf32>
    %64 = arith.addf %3, %63 : vector<2x32xf32>
    %c0_38 = arith.constant 0 : index
    %c0_39 = arith.constant 0 : index
    %65 = vector.load %arg12[%c0_38, %c0_39] : memref<1x32xf32, #tpu.memory_space<vmem>>, vector<1x32xf32>
    %c0_40 = arith.constant 0 : index
    %c0_41 = arith.constant 0 : index
    %66 = vector.load %arg13[%c0_40, %c0_41] : memref<1x32xf32, #tpu.memory_space<vmem>>, vector<1x32xf32>
    %cst_42 = arith.constant dense<0.000000e+00> : vector<2xf32>
    %67 = vector.multi_reduction <add>, %64, %cst_42 [1] : vector<2x32xf32> to vector<2xf32>
    %68 = vector.shape_cast %67 : vector<2xf32> to vector<2x1xf32>
    %cst_43 = arith.constant 3.200000e+01 : f32
    %69 = vector.broadcast %cst_43 : f32 to vector<2x1xf32>
    %70 = arith.divf %68, %69 : vector<2x1xf32>
    %71 = vector.broadcast %70 : vector<2x1xf32> to vector<2x32xf32>
    %72 = arith.subf %64, %71 : vector<2x32xf32>
    %73 = arith.mulf %72, %72 : vector<2x32xf32>
    %cst_44 = arith.constant dense<0.000000e+00> : vector<2xf32>
    %74 = vector.multi_reduction <add>, %73, %cst_44 [1] : vector<2x32xf32> to vector<2xf32>
    %75 = vector.shape_cast %74 : vector<2xf32> to vector<2x1xf32>
    %cst_45 = arith.constant 3.200000e+01 : f32
    %76 = vector.broadcast %cst_45 : f32 to vector<2x1xf32>
    %77 = arith.divf %75, %76 : vector<2x1xf32>
    %cst_46 = arith.constant 9.99999974E-6 : f32
    %78 = vector.broadcast %cst_46 : f32 to vector<2x1xf32>
    %79 = arith.addf %77, %78 : vector<2x1xf32>
    %80 = math.rsqrt %79 : vector<2x1xf32>
    %81 = vector.broadcast %80 : vector<2x1xf32> to vector<2x32xf32>
    %82 = arith.mulf %72, %81 : vector<2x32xf32>
    %83 = vector.broadcast %65 : vector<1x32xf32> to vector<2x32xf32>
    %84 = arith.mulf %82, %83 : vector<2x32xf32>
    %85 = vector.broadcast %66 : vector<1x32xf32> to vector<2x32xf32>
    %86 = arith.addf %84, %85 : vector<2x32xf32>
    %cst_47 = arith.constant 5.000000e-01 : f32
    %87 = vector.broadcast %cst_47 : f32 to vector<2x32xf32>
    %88 = arith.mulf %87, %86 : vector<2x32xf32>
    %cst_48 = arith.constant 0.707106769 : f32
    %89 = vector.broadcast %cst_48 : f32 to vector<2x32xf32>
    %90 = arith.mulf %86, %89 : vector<2x32xf32>
    %91 = math.absf %90 : vector<2x32xf32>
    %cst_49 = arith.constant 0.327591091 : f32
    %92 = vector.broadcast %cst_49 : f32 to vector<2x32xf32>
    %93 = arith.mulf %92, %91 : vector<2x32xf32>
    %cst_50 = arith.constant 1.000000e+00 : f32
    %94 = vector.broadcast %cst_50 : f32 to vector<2x32xf32>
    %95 = arith.addf %94, %93 : vector<2x32xf32>
    %cst_51 = arith.constant 1.000000e+00 : f32
    %96 = vector.broadcast %cst_51 : f32 to vector<2x32xf32>
    %97 = arith.divf %96, %95 : vector<2x32xf32>
    %cst_52 = arith.constant 1.06140542 : f32
    %98 = vector.broadcast %cst_52 : f32 to vector<2x32xf32>
    %99 = arith.mulf %98, %97 : vector<2x32xf32>
    %cst_53 = arith.constant -1.45315206 : f32
    %100 = vector.broadcast %cst_53 : f32 to vector<2x32xf32>
    %101 = arith.addf %99, %100 : vector<2x32xf32>
    %102 = arith.mulf %101, %97 : vector<2x32xf32>
    %cst_54 = arith.constant 1.42141378 : f32
    %103 = vector.broadcast %cst_54 : f32 to vector<2x32xf32>
    %104 = arith.addf %102, %103 : vector<2x32xf32>
    %105 = arith.mulf %104, %97 : vector<2x32xf32>
    %cst_55 = arith.constant -0.284496725 : f32
    %106 = vector.broadcast %cst_55 : f32 to vector<2x32xf32>
    %107 = arith.addf %105, %106 : vector<2x32xf32>
    %108 = arith.mulf %107, %97 : vector<2x32xf32>
    %cst_56 = arith.constant 0.254829586 : f32
    %109 = vector.broadcast %cst_56 : f32 to vector<2x32xf32>
    %110 = arith.addf %108, %109 : vector<2x32xf32>
    %111 = arith.mulf %110, %97 : vector<2x32xf32>
    %cst_57 = arith.constant 0.000000e+00 : f32
    %112 = vector.broadcast %cst_57 : f32 to vector<2x32xf32>
    %113 = arith.subf %112, %91 : vector<2x32xf32>
    %114 = arith.mulf %113, %91 : vector<2x32xf32>
    %115 = math.exp %114 : vector<2x32xf32>
    %116 = arith.mulf %111, %115 : vector<2x32xf32>
    %cst_58 = arith.constant 1.000000e+00 : f32
    %117 = vector.broadcast %cst_58 : f32 to vector<2x32xf32>
    %118 = arith.subf %117, %116 : vector<2x32xf32>
    %cst_59 = arith.constant 0.000000e+00 : f32
    %119 = vector.broadcast %cst_59 : f32 to vector<2x32xf32>
    %120 = arith.cmpf oge, %90, %119 : vector<2x32xf32>
    %cst_60 = arith.constant 0.000000e+00 : f32
    %121 = vector.broadcast %cst_60 : f32 to vector<2x32xf32>
    %122 = arith.subf %121, %118 : vector<2x32xf32>
    %123 = arith.select %120, %118, %122 : vector<2x32xi1>, vector<2x32xf32>
    %cst_61 = arith.constant 1.000000e+00 : f32
    %124 = vector.broadcast %cst_61 : f32 to vector<2x32xf32>
    %125 = arith.addf %124, %123 : vector<2x32xf32>
    %126 = arith.mulf %88, %125 : vector<2x32xf32>
    %c0_62 = arith.constant 0 : index
    %c0_63 = arith.constant 0 : index
    %127 = vector.load %arg14[%c0_62, %c0_63] : memref<2x32xf32, #tpu.memory_space<vmem>>, vector<2x32xf32>
    tpu.vector_store %arg14[%c0_62, %c0_63], %126 {strides = array<i32>} : memref<2x32xf32, #tpu.memory_space<vmem>>, vector<2x32xf32>,
    return
  }
}

</mosaic_0001>

<llo_original>
// kernel: tpu_custom_call.1
$region0: #{tpu_custom_call.1}
  #allocation0 [shape = 'u32[]', space=smem, size = 0x4, offset = 0x4, fixed_abs, tag = 'smem constant byte address 0x4 - core index']
  #allocation1 [shape = 'u32[144,128]{1,0:T(1,128)}', space=vmem, size = 0x12000, scoped, tag = 'internal scratch']
  %s0 = inlined_call_operand.vmem [shape: f32[2,64,32], index: 0, kind: input, shape index: {}]
  %s1 = inlined_call_operand.vmem [shape: f32[1,32], index: 1, kind: input, shape index: {}]
  %s2 = inlined_call_operand.vmem [shape: f32[1,32], index: 2, kind: input, shape index: {}]
  %s3 = inlined_call_operand.vmem [shape: f32[1,32], index: 3, kind: input, shape index: {}]
  %s4 = inlined_call_operand.vmem [shape: f32[32,32], index: 4, kind: input, shape index: {}]
  %s5 = inlined_call_operand.vmem [shape: f32[1,32], index: 5, kind: input, shape index: {}]
  %s6 = inlined_call_operand.vmem [shape: f32[32,32], index: 6, kind: input, shape index: {}]
  %s7 = inlined_call_operand.vmem [shape: f32[1,32], index: 7, kind: input, shape index: {}]
  %s8 = inlined_call_operand.vmem [shape: f32[32,32], index: 8, kind: input, shape index: {}]
  %s9 = inlined_call_operand.vmem [shape: f32[1,32], index: 9, kind: input, shape index: {}]
  %s10 = inlined_call_operand.vmem [shape: f32[32,32], index: 10, kind: input, shape index: {}]
  %s11 = inlined_call_operand.vmem [shape: f32[1,32], index: 11, kind: input, shape index: {}]
  %s12 = inlined_call_operand.vmem [shape: f32[1,32], index: 12, kind: input, shape index: {}]
  %s13 = inlined_call_operand.vmem [shape: f32[1,32], index: 13, kind: input, shape index: {}]
  %s14 = inlined_call_operand.hbm [shape: f32[2,32], index: 14, kind: output, shape index: {}]
  %s15 = sld [smem:[#allocation0]]
  $region66: #{tpu_custom_call.1} parent=0
    _
  %s17 = ssub.s32 1, %s15
  %s18 = scalar_select 0, %s17, %s15
  $region1: #{tpu_custom_call.1} parent=0
    #allocation2 [shape = 'u8[1024]{0}', space=vmem, size = 0x400, scoped, tag = 'output window, operand 0, single buffered']
    #allocation3 [shape = 's32[1]{0}', space=sflag, size = 0x4, scoped, tag = 'scoped memory for tpu_custom_call.1']
    %19 = vsyncpa [#allocation3], 0
    // Predicated region
    $region2: #{tpu_custom_call.1} parent=1 // pred_check
      _
    $region3: #{tpu_custom_call.1} parent=1 // pred_check_branch
      %21 = sbr.rel (0) target = $region5
    $region4: #{tpu_custom_call.1} parent=1 // pred_region
      _
    $region5: #{tpu_custom_call.1} parent=1 // pred_fallthru
      _
    // Predicated region
    $region6: #{tpu_custom_call.1} parent=1 // pred_check
      _
    $region7: #{tpu_custom_call.1} parent=1 // pred_check_branch
      %23 = sbr.rel (0) target = $region9
    $region8: #{tpu_custom_call.1} parent=1 // pred_region
      _
    $region9: #{tpu_custom_call.1} parent=1 // pred_fallthru
      _
    // Predicated region
    $region10: #{tpu_custom_call.1} parent=1 // pred_check
      _
    $region11: #{tpu_custom_call.1} parent=1 // pred_check_branch
      %25 = sbr.rel (0) target = $region13
    $region12: #{tpu_custom_call.1} parent=1 // pred_region
      _
    $region13: #{tpu_custom_call.1} parent=1 // pred_fallthru
      _
    // Predicated region
    $region14: #{tpu_custom_call.1} parent=1 // pred_check
      _
    $region15: #{tpu_custom_call.1} parent=1 // pred_check_branch
      %27 = sbr.rel (0) target = $region17
    $region16: #{tpu_custom_call.1} parent=1 // pred_region
      _
    $region17: #{tpu_custom_call.1} parent=1 // pred_fallthru
      _
    // Predicated region
    $region18: #{tpu_custom_call.1} parent=1 // pred_check
      _
    $region19: #{tpu_custom_call.1} parent=1 // pred_check_branch
      %29 = sbr.rel (0) target = $region21
    $region20: #{tpu_custom_call.1} parent=1 // pred_region
      _
    $region21: #{tpu_custom_call.1} parent=1 // pred_fallthru
      _
    // Predicated region
    $region22: #{tpu_custom_call.1} parent=1 // pred_check
      _
    $region23: #{tpu_custom_call.1} parent=1 // pred_check_branch
      %31 = sbr.rel (0) target = $region25
    $region24: #{tpu_custom_call.1} parent=1 // pred_region
      _
    $region25: #{tpu_custom_call.1} parent=1 // pred_fallthru
      _
    // Predicated region
    $region26: #{tpu_custom_call.1} parent=1 // pred_check
      _
    $region27: #{tpu_custom_call.1} parent=1 // pred_check_branch
      %33 = sbr.rel (0) target = $region29
    $region28: #{tpu_custom_call.1} parent=1 // pred_region
      _
    $region29: #{tpu_custom_call.1} parent=1 // pred_fallthru
      _
    // Predicated region
    $region30: #{tpu_custom_call.1} parent=1 // pred_check
      _
    $region31: #{tpu_custom_call.1} parent=1 // pred_check_branch
      %35 = sbr.rel (0) target = $region33
    $region32: #{tpu_custom_call.1} parent=1 // pred_region
      _
    $region33: #{tpu_custom_call.1} parent=1 // pred_fallthru
      _
    // Predicated region
    $region34: #{tpu_custom_call.1} parent=1 // pred_check
      _
    $region35: #{tpu_custom_call.1} parent=1 // pred_check_branch
      %37 = sbr.rel (0) target = $region37
    $region36: #{tpu_custom_call.1} parent=1 // pred_region
      _
    $region37: #{tpu_custom_call.1} parent=1 // pred_fallthru
      _
    // Predicated region
    $region38: #{tpu_custom_call.1} parent=1 // pred_check
      _
    $region39: #{tpu_custom_call.1} parent=1 // pred_check_branch
      %39 = sbr.rel (0) target = $region41
    $region40: #{tpu_custom_call.1} parent=1 // pred_region
      _
    $region41: #{tpu_custom_call.1} parent=1 // pred_fallthru
      _
    // Predicated region
    $region42: #{tpu_custom_call.1} parent=1 // pred_check
      _
    $region43: #{tpu_custom_call.1} parent=1 // pred_check_branch
      %41 = sbr.rel (0) target = $region45
    $region44: #{tpu_custom_call.1} parent=1 // pred_region
      _
    $region45: #{tpu_custom_call.1} parent=1 // pred_fallthru
      _
    // Predicated region
    $region46: #{tpu_custom_call.1} parent=1 // pred_check
      _
    $region47: #{tpu_custom_call.1} parent=1 // pred_check_branch
      %43 = sbr.rel (0) target = $region49
    $region48: #{tpu_custom_call.1} parent=1 // pred_region
      _
    $region49: #{tpu_custom_call.1} parent=1 // pred_fallthru
      _
    // Predicated region
    $region50: #{tpu_custom_call.1} parent=1 // pred_check
      _
    $region51: #{tpu_custom_call.1} parent=1 // pred_check_branch
      %45 = sbr.rel (0) target = $region53
    $region52: #{tpu_custom_call.1} parent=1 // pred_region
      _
    $region53: #{tpu_custom_call.1} parent=1 // pred_fallthru
      _
    // Predicated region
    $region54: #{tpu_custom_call.1} parent=1 // pred_check
      _
    $region55: #{tpu_custom_call.1} parent=1 // pred_check_branch
      %47 = sbr.rel (0) target = $region57
    $region56: #{tpu_custom_call.1} parent=1 // pred_region
      _
    $region57: #{tpu_custom_call.1} parent=1 // pred_fallthru
      _
    %v48 = vld [vmem:[%s0] sm:$0xff]
    %v49 = vld [vmem:[%s0 + $0x8] sm:$0xff]
    %v50 = vld [vmem:[%s0 + $0x10] sm:$0xff]
    %v51 = vld [vmem:[%s0 + $0x18] sm:$0xff]
    %v52 = vld [vmem:[%s0 + $0x20] sm:$0xff]
    %v53 = vld [vmem:[%s0 + $0x28] sm:$0xff]
    %v54 = vld [vmem:[%s0 + $0x30] sm:$0xff]
    %v55 = vld [vmem:[%s0 + $0x38] sm:$0xff]
    %v56 = vld [vmem:[%s0 + $0x40] sm:$0xff]
    %v57 = vld [vmem:[%s0 + $0x48] sm:$0xff]
    %v58 = vld [vmem:[%s0 + $0x50] sm:$0xff]
    %v59 = vld [vmem:[%s0 + $0x58] sm:$0xff]
    %v60 = vld [vmem:[%s0 + $0x60] sm:$0xff]
    %v61 = vld [vmem:[%s0 + $0x68] sm:$0xff]
    %v62 = vld [vmem:[%s0 + $0x70] sm:$0xff]
    %v63 = vld [vmem:[%s0 + $0x78] sm:$0xff]
    %vm64 = vcmask 261120
    %v65 = vsel %vm64, %v48, 0.0
    %v66 = vsel %vm64, %v49, 0.0
    %v67 = vadd.f32 %v65, %v66
    %v68 = vsel %vm64, %v50, 0.0
    %v69 = vadd.f32 %v67, %v68
    %v70 = vsel %vm64, %v51, 0.0
    %v71 = vadd.f32 %v69, %v70
    %v72 = vsel %vm64, %v52, 0.0
    %v73 = vadd.f32 %v71, %v72
    %v74 = vsel %vm64, %v53, 0.0
    %v75 = vadd.f32 %v73, %v74
    %v76 = vsel %vm64, %v54, 0.0
    %v77 = vadd.f32 %v75, %v76
    %v78 = vsel %vm64, %v55, 0.0
    %v79 = vadd.f32 %v77, %v78
    %v80 = vrot.slane %v79, 4
    %v81 = vadd.f32 %v79, %v80
    %v82 = vrot.slane %v81, 2
    %v83 = vadd.f32 %v81, %v82
    %v84 = vrot.slane %v83, 1
    %v85 = vadd.f32 %v83, %v84
    %v86 = vsel %vm64, %v56, 0.0
    %v87 = vsel %vm64, %v57, 0.0
    %v88 = vadd.f32 %v86, %v87
    %v89 = vsel %vm64, %v58, 0.0
    %v90 = vadd.f32 %v88, %v89
    %v91 = vsel %vm64, %v59, 0.0
    %v92 = vadd.f32 %v90, %v91
    %v93 = vsel %vm64, %v60, 0.0
    %v94 = vadd.f32 %v92, %v93
    %v95 = vsel %vm64, %v61, 0.0
    %v96 = vadd.f32 %v94, %v95
    %v97 = vsel %vm64, %v62, 0.0
    %v98 = vadd.f32 %v96, %v97
    %v99 = vsel %vm64, %v63, 0.0
    %v100 = vadd.f32 %v98, %v99
    %v101 = vrot.slane %v100, 4
    %v102 = vadd.f32 %v100, %v101
    %v103 = vrot.slane %v102, 2
    %v104 = vadd.f32 %v102, %v103
    %v105 = vrot.slane %v104, 1
    %v106 = vadd.f32 %v104, %v105
    %v107 = vrcp.pop 64.0
    %v108 = vmul.f32 %v85, %v107
    %v109 = vmul.f32 %v106, %v107
    %v110 = vld [vmem:[%s2] sm:$0x1]
    %v111 = vld [vmem:[%s3] sm:$0x1]
    %112 = vadd.xlane.f32.xlu0 %v65
    %v113 = vpop.xlane.xlu0 %112
    %114 = vadd.xlane.f32.xlu0 %v66
    %v115 = vpop.xlane.xlu0 %114
    %116 = vadd.xlane.f32.xlu0 %v68
    %v117 = vpop.xlane.xlu0 %116
    %118 = vadd.xlane.f32.xlu0 %v70
    %v119 = vpop.xlane.xlu0 %118
    %120 = vadd.xlane.f32.xlu0 %v72
    %v121 = vpop.xlane.xlu0 %120
    %122 = vadd.xlane.f32.xlu0 %v74
    %v123 = vpop.xlane.xlu0 %122
    %124 = vadd.xlane.f32.xlu0 %v76
    %v125 = vpop.xlane.xlu0 %124
    %126 = vadd.xlane.f32.xlu0 %v78
    %v127 = vpop.xlane.xlu0 %126
    %128 = vadd.xlane.f32.xlu0 %v86
    %v129 = vpop.xlane.xlu0 %128
    %130 = vadd.xlane.f32.xlu0 %v87
    %v131 = vpop.xlane.xlu0 %130
    %132 = vadd.xlane.f32.xlu0 %v89
    %v133 = vpop.xlane.xlu0 %132
    %134 = vadd.xlane.f32.xlu0 %v91
    %v135 = vpop.xlane.xlu0 %134
    %136 = vadd.xlane.f32.xlu0 %v93
    %v137 = vpop.xlane.xlu0 %136
    %138 = vadd.xlane.f32.xlu0 %v95
    %v139 = vpop.xlane.xlu0 %138
    %140 = vadd.xlane.f32.xlu0 %v97
    %v141 = vpop.xlane.xlu0 %140
    %142 = vadd.xlane.f32.xlu0 %v99
    %v143 = vpop.xlane.xlu0 %142
    %v144 = vrcp.pop 32.0
    %v145 = vmul.f32 %v113, %v144
    %v146 = vmul.f32 %v115, %v144
    %v147 = vmul.f32 %v117, %v144
    %v148 = vmul.f32 %v119, %v144
    %v149 = vmul.f32 %v121, %v144
    %v150 = vmul.f32 %v123, %v144
    %v151 = vmul.f32 %v125, %v144
    %v152 = vmul.f32 %v127, %v144
    %v153 = vmul.f32 %v129, %v144
    %v154 = vmul.f32 %v131, %v144
    %v155 = vmul.f32 %v133, %v144
    %v156 = vmul.f32 %v135, %v144
    %v157 = vmul.f32 %v137, %v144
    %v158 = vmul.f32 %v139, %v144
    %v159 = vmul.f32 %v141, %v144
    %v160 = vmul.f32 %v143, %v144
    %v161 = vsub.f32 %v48, %v145
    %v162 = vsub.f32 %v49, %v146
    %v163 = vsub.f32 %v50, %v147
    %v164 = vsub.f32 %v51, %v148
    %v165 = vsub.f32 %v52, %v149
    %v166 = vsub.f32 %v53, %v150
    %v167 = vsub.f32 %v54, %v151
    %v168 = vsub.f32 %v55, %v152
    %v169 = vsub.f32 %v56, %v153
    %v170 = vsub.f32 %v57, %v154
    %v171 = vsub.f32 %v58, %v155
    %v172 = vsub.f32 %v59, %v156
    %v173 = vsub.f32 %v60, %v157
    %v174 = vsub.f32 %v61, %v158
    %v175 = vsub.f32 %v62, %v159
    %v176 = vsub.f32 %v63, %v160
    %v177 = vmul.f32 %v161, %v161
    %v178 = vmul.f32 %v162, %v162
    %v179 = vmul.f32 %v163, %v163
    %v180 = vmul.f32 %v164, %v164
    %v181 = vmul.f32 %v165, %v165
    %v182 = vmul.f32 %v166, %v166
    %v183 = vmul.f32 %v167, %v167
    %v184 = vmul.f32 %v168, %v168
    %v185 = vmul.f32 %v169, %v169
    %v186 = vmul.f32 %v170, %v170
    %v187 = vmul.f32 %v171, %v171
    %v188 = vmul.f32 %v172, %v172
    %v189 = vmul.f32 %v173, %v173
    %v190 = vmul.f32 %v174, %v174
    %v191 = vmul.f32 %v175, %v175
    %v192 = vmul.f32 %v176, %v176
    %v193 = vsel %vm64, %v177, 0.0
    %194 = vadd.xlane.f32.xlu0 %v193
    %v195 = vpop.xlane.xlu0 %194
    %v196 = vsel %vm64, %v178, 0.0
    %197 = vadd.xlane.f32.xlu0 %v196
    %v198 = vpop.xlane.xlu0 %197
    %v199 = vsel %vm64, %v179, 0.0
    %200 = vadd.xlane.f32.xlu0 %v199
    %v201 = vpop.xlane.xlu0 %200
    %v202 = vsel %vm64, %v180, 0.0
    %203 = vadd.xlane.f32.xlu0 %v202
    %v204 = vpop.xlane.xlu0 %203
    %v205 = vsel %vm64, %v181, 0.0
    %206 = vadd.xlane.f32.xlu0 %v205
    %v207 = vpop.xlane.xlu0 %206
    %v208 = vsel %vm64, %v182, 0.0
    %209 = vadd.xlane.f32.xlu0 %v208
    %v210 = vpop.xlane.xlu0 %209
    %v211 = vsel %vm64, %v183, 0.0
    %212 = vadd.xlane.f32.xlu0 %v211
    %v213 = vpop.xlane.xlu0 %212
    %v214 = vsel %vm64, %v184, 0.0
    %215 = vadd.xlane.f32.xlu0 %v214
    %v216 = vpop.xlane.xlu0 %215
    %v217 = vsel %vm64, %v185, 0.0
    %218 = vadd.xlane.f32.xlu0 %v217
    %v219 = vpop.xlane.xlu0 %218
    %v220 = vsel %vm64, %v186, 0.0
    %221 = vadd.xlane.f32.xlu0 %v220
    %v222 = vpop.xlane.xlu0 %221
    %v223 = vsel %vm64, %v187, 0.0
    %224 = vadd.xlane.f32.xlu0 %v223
    %v225 = vpop.xlane.xlu0 %224
    %v226 = vsel %vm64, %v188, 0.0
    %227 = vadd.xlane.f32.xlu0 %v226
    %v228 = vpop.xlane.xlu0 %227
    %v229 = vsel %vm64, %v189, 0.0
    %230 = vadd.xlane.f32.xlu0 %v229
    %v231 = vpop.xlane.xlu0 %230
    %v232 = vsel %vm64, %v190, 0.0
    %233 = vadd.xlane.f32.xlu0 %v232
    %v234 = vpop.xlane.xlu0 %233
    %v235 = vsel %vm64, %v191, 0.0
    %236 = vadd.xlane.f32.xlu0 %v235
    %v237 = vpop.xlane.xlu0 %236
    %v238 = vsel %vm64, %v192, 0.0
    %239 = vadd.xlane.f32.xlu0 %v238
    %v240 = vpop.xlane.xlu0 %239
    %v241 = vmul.f32 %v195, %v144
    %v242 = vmul.f32 %v198, %v144
    %v243 = vmul.f32 %v201, %v144
    %v244 = vmul.f32 %v204, %v144
    %v245 = vmul.f32 %v207, %v144
    %v246 = vmul.f32 %v210, %v144
    %v247 = vmul.f32 %v213, %v144
    %v248 = vmul.f32 %v216, %v144
    %v249 = vmul.f32 %v219, %v144
    %v250 = vmul.f32 %v222, %v144
    %v251 = vmul.f32 %v225, %v144
    %v252 = vmul.f32 %v228, %v144
    %v253 = vmul.f32 %v231, %v144
    %v254 = vmul.f32 %v234, %v144
    %v255 = vmul.f32 %v237, %v144
    %v256 = vmul.f32 %v240, %v144
    %v257 = vadd.f32 %v241, 1e-05
    %v258 = vadd.f32 %v242, 1e-05
    %v259 = vadd.f32 %v243, 1e-05
    %v260 = vadd.f32 %v244, 1e-05
    %v261 = vadd.f32 %v245, 1e-05
    %v262 = vadd.f32 %v246, 1e-05
    %v263 = vadd.f32 %v247, 1e-05
    %v264 = vadd.f32 %v248, 1e-05
    %v265 = vadd.f32 %v249, 1e-05
    %v266 = vadd.f32 %v250, 1e-05
    %v267 = vadd.f32 %v251, 1e-05
    %v268 = vadd.f32 %v252, 1e-05
    %v269 = vadd.f32 %v253, 1e-05
    %v270 = vadd.f32 %v254, 1e-05
    %v271 = vadd.f32 %v255, 1e-05
    %v272 = vadd.f32 %v256, 1e-05
    %v273 = vrsqrt.pop %v257
    %v274 = vrsqrt.pop %v258
    %v275 = vrsqrt.pop %v259
    %v276 = vrsqrt.pop %v260
    %v277 = vrsqrt.pop %v261
    %v278 = vrsqrt.pop %v262
    %v279 = vrsqrt.pop %v263
    %v280 = vrsqrt.pop %v264
    %v281 = vrsqrt.pop %v265
    %v282 = vrsqrt.pop %v266
    %v283 = vrsqrt.pop %v267
    %v284 = vrsqrt.pop %v268
    %v285 = vrsqrt.pop %v269
    %v286 = vrsqrt.pop %v270
    %v287 = vrsqrt.pop %v271
    %v288 = vrsqrt.pop %v272
    %v289 = vmul.f32 %v161, %v273
    %v290 = vmul.f32 %v162, %v274
    %v291 = vmul.f32 %v163, %v275
    %v292 = vmul.f32 %v164, %v276
    %v293 = vmul.f32 %v165, %v277
    %v294 = vmul.f32 %v166, %v278
    %v295 = vmul.f32 %v167, %v279
    %v296 = vmul.f32 %v168, %v280
    %v297 = vmul.f32 %v169, %v281
    %v298 = vmul.f32 %v170, %v282
    %v299 = vmul.f32 %v171, %v283
    %v300 = vmul.f32 %v172, %v284
    %v301 = vmul.f32 %v173, %v285
    %v302 = vmul.f32 %v174, %v286
    %v303 = vmul.f32 %v175, %v287
    %v304 = vmul.f32 %v176, %v288
    %v306 = vlaneseq
    %v307 = vshrl.u32 %v306, 7
    %v308 = vsub.s32 0, %v307
    %v309 = vrot.slane %v110, %v308
    %v311 = vmul.f32 %v289, %v309
    %v312 = vmul.f32 %v290, %v309
    %v313 = vmul.f32 %v291, %v309
    %v314 = vmul.f32 %v292, %v309
    %v315 = vmul.f32 %v293, %v309
    %v316 = vmul.f32 %v294, %v309
    %v317 = vmul.f32 %v295, %v309
    %v318 = vmul.f32 %v296, %v309
    %v319 = vmul.f32 %v297, %v309
    %v320 = vmul.f32 %v298, %v309
    %v321 = vmul.f32 %v299, %v309
    %v322 = vmul.f32 %v300, %v309
    %v323 = vmul.f32 %v301, %v309
    %v324 = vmul.f32 %v302, %v309
    %v325 = vmul.f32 %v303, %v309
    %v326 = vmul.f32 %v304, %v309
    %v328 = vlaneseq
    %v329 = vshrl.u32 %v328, 7
    %v330 = vsub.s32 0, %v329
    %v331 = vrot.slane %v111, %v330
    %v333 = vadd.f32 %v311, %v331
    %v334 = vadd.f32 %v312, %v331
    %v335 = vadd.f32 %v313, %v331
    %v336 = vadd.f32 %v314, %v331
    %v337 = vadd.f32 %v315, %v331
    %v338 = vadd.f32 %v316, %v331
    %v339 = vadd.f32 %v317, %v331
    %v340 = vadd.f32 %v318, %v331
    %v341 = vadd.f32 %v319, %v331
    %v342 = vadd.f32 %v320, %v331
    %v343 = vadd.f32 %v321, %v331
    %v344 = vadd.f32 %v322, %v331
    %v345 = vadd.f32 %v323, %v331
    %v346 = vadd.f32 %v324, %v331
    %v347 = vadd.f32 %v325, %v331
    %v348 = vadd.f32 %v326, %v331
    %v349 = vld [vmem:[%s1] sm:$0x1]
    %v350 = vld [vmem:[%s4] sm:$0xff]
    %v351 = vld [vmem:[%s4 + $0x8] sm:$0xff]
    %v352 = vld [vmem:[%s4 + $0x10] sm:$0xff]
    %v353 = vld [vmem:[%s4 + $0x18] sm:$0xff]
    %v354 = vld [vmem:[%s5] sm:$0x1]
    %v356 = vsel %vm64, %v349, 0
    %358 = vmatprep.subr.mxu0 0.0
    %359 = vmatpush1.msra.mxu0 0.0
    %360 = vmatprep.subr.mxu0 0.0
    %361 = vmatpush1.msra.mxu0 0.0
    %362 = vmatprep.subr.mxu0 0.0
    %363 = vmatpush1.msra.mxu0 0.0
    %364 = vmatprep.subr.mxu0 0.0
    %365 = vmatpush1.msra.mxu0 0.0
    %366 = vmatprep.subr.mxu0 0.0
    %367 = vmatpush1.msra.mxu0 0.0
    %368 = vmatprep.subr.mxu0 0.0
    %369 = vmatpush1.msra.mxu0 0.0
    %370 = vmatprep.subr.mxu0 0.0
    %371 = vmatpush1.msra.mxu0 0.0
    %372 = vmatprep.subr.mxu0 0.0
    %373 = vmatpush1.msra.mxu0 0.0
    %374 = vmatprep.subr.mxu0 0.0
    %375 = vmatpush1.msra.mxu0 0.0
    %376 = vmatprep.subr.mxu0 0.0
    %377 = vmatpush1.msra.mxu0 0.0
    %378 = vmatprep.subr.mxu0 0.0
    %379 = vmatpush1.msra.mxu0 0.0
    %380 = vmatprep.subr.mxu0 0.0
    %381 = vmatpush1.msra.mxu0 0.0
    %382 = vmatprep.subr.mxu0 0.0
    %383 = vmatpush1.msra.mxu0 %v353
    %384 = vmatprep.subr.mxu0 0.0
    %385 = vmatpush1.msra.mxu0 %v352
    %386 = vmatprep.subr.mxu0 0.0
    %387 = vmatpush1.msra.mxu0 %v351
    %388 = vmatprep.subr.mxu0 0.0
    %389 = vmatpush1.msra.mxu0 %v350
    %390 = vmatprep.subr.mxu0 0.0
    %391 = vmatpush2.msra.mxu0 0.0
    %392 = vmatprep.subr.mxu0 0.0
    %393 = vmatpush2.msra.mxu0 0.0
    %394 = vmatprep.subr.mxu0 0.0
    %395 = vmatpush2.msra.mxu0 0.0
    %396 = vmatprep.subr.mxu0 0.0
    %397 = vmatpush2.msra.mxu0 0.0
    %398 = vmatprep.subr.mxu0 0.0
    %399 = vmatpush2.msra.mxu0 0.0
    %400 = vmatprep.subr.mxu0 0.0
    %401 = vmatpush2.msra.mxu0 0.0
    %402 = vmatprep.subr.mxu0 0.0
    %403 = vmatpush2.msra.mxu0 0.0
    %404 = vmatprep.subr.mxu0 0.0
    %405 = vmatpush2.msra.mxu0 0.0
    %406 = vmatprep.subr.mxu0 0.0
    %407 = vmatpush2.msra.mxu0 0.0
    %408 = vmatprep.subr.mxu0 0.0
    %409 = vmatpush2.msra.mxu0 0.0
    %410 = vmatprep.subr.mxu0 0.0
    %411 = vmatpush2.msra.mxu0 0.0
    %412 = vmatprep.subr.mxu0 0.0
    %413 = vmatpush2.msra.mxu0 0.0
    %414 = vmatprep.subr.mxu0 0.0
    %415 = vmatpush2.msra.mxu0 0.0
    %416 = vmatprep.subr.mxu0 0.0
    %417 = vmatpush2.msra.mxu0 0.0
    %418 = vmatprep.subr.mxu0 0.0
    %419 = vmatpush2.msra.mxu0 0.0
    %420 = vmatprep.subr.mxu0 0.0
    %421 = vmatpush2.msra.mxu0 0.0
    %422 = vmatprep.mubr.f32.mxu0 0.0
    %423 = vmatmul.mubr.f32.gmra.mxu0 %v356
    %v424 = vpop.f32.mrf.mxu0
    %v425 = vadd.f32 %v354, %v424
    %v426 = vpop.f32.mrf.mxu0
    %427 = vdwg.mxu0
    %v428 = vld [vmem:[%s6] sm:$0xff]
    %v429 = vld [vmem:[%s6 + $0x8] sm:$0xff]
    %v430 = vld [vmem:[%s6 + $0x10] sm:$0xff]
    %v431 = vld [vmem:[%s6 + $0x18] sm:$0xff]
    %v432 = vld [vmem:[%s7] sm:$0x1]
    %v434 = vlaneseq
    %v435 = vshrl.u32 %v434, 7
    %v436 = vsub.s32 0, %v435
    %v437 = vrot.slane %v432, %v436
    %v440 = vsel %vm64, %v333, 0
    %v443 = vsel %vm64, %v334, 0
    %v446 = vsel %vm64, %v335, 0
    %v449 = vsel %vm64, %v336, 0
    %v452 = vsel %vm64, %v337, 0
    %v455 = vsel %vm64, %v338, 0
    %v458 = vsel %vm64, %v339, 0
    %v461 = vsel %vm64, %v340, 0
    %v464 = vsel %vm64, %v341, 0
    %v467 = vsel %vm64, %v342, 0
    %v470 = vsel %vm64, %v343, 0
    %v473 = vsel %vm64, %v344, 0
    %v476 = vsel %vm64, %v345, 0
    %v479 = vsel %vm64, %v346, 0
    %v482 = vsel %vm64, %v347, 0
    %v485 = vsel %vm64, %v348, 0
    %487 = vmatprep.subr.mxu0 0.0
    %488 = vmatpush1.msra.mxu0 0.0
    %489 = vmatprep.subr.mxu0 0.0
    %490 = vmatpush1.msra.mxu0 0.0
    %491 = vmatprep.subr.mxu0 0.0
    %492 = vmatpush1.msra.mxu0 0.0
    %493 = vmatprep.subr.mxu0 0.0
    %494 = vmatpush1.msra.mxu0 0.0
    %495 = vmatprep.subr.mxu0 0.0
    %496 = vmatpush1.msra.mxu0 0.0
    %497 = vmatprep.subr.mxu0 0.0
    %498 = vmatpush1.msra.mxu0 0.0
    %499 = vmatprep.subr.mxu0 0.0
    %500 = vmatpush1.msra.mxu0 0.0
    %501 = vmatprep.subr.mxu0 0.0
    %502 = vmatpush1.msra.mxu0 0.0
    %503 = vmatprep.subr.mxu0 0.0
    %504 = vmatpush1.msra.mxu0 0.0
    %505 = vmatprep.subr.mxu0 0.0
    %506 = vmatpush1.msra.mxu0 0.0
    %507 = vmatprep.subr.mxu0 0.0
    %508 = vmatpush1.msra.mxu0 0.0
    %509 = vmatprep.subr.mxu0 0.0
    %510 = vmatpush1.msra.mxu0 0.0
    %511 = vmatprep.subr.mxu0 0.0
    %512 = vmatpush1.msra.mxu0 %v431
    %513 = vmatprep.subr.mxu0 0.0
    %514 = vmatpush1.msra.mxu0 %v430
    %515 = vmatprep.subr.mxu0 0.0
    %516 = vmatpush1.msra.mxu0 %v429
    %517 = vmatprep.subr.mxu0 0.0
    %518 = vmatpush1.msra.mxu0 %v428
    %519 = vmatprep.subr.mxu0 0.0
    %520 = vmatpush2.msra.mxu0 0.0
    %521 = vmatprep.subr.mxu0 0.0
    %522 = vmatpush2.msra.mxu0 0.0
    %523 = vmatprep.subr.mxu0 0.0
    %524 = vmatpush2.msra.mxu0 0.0
    %525 = vmatprep.subr.mxu0 0.0
    %526 = vmatpush2.msra.mxu0 0.0
    %527 = vmatprep.subr.mxu0 0.0
    %528 = vmatpush2.msra.mxu0 0.0
    %529 = vmatprep.subr.mxu0 0.0
    %530 = vmatpush2.msra.mxu0 0.0
    %531 = vmatprep.subr.mxu0 0.0
    %532 = vmatpush2.msra.mxu0 0.0
    %533 = vmatprep.subr.mxu0 0.0
    %534 = vmatpush2.msra.mxu0 0.0
    %535 = vmatprep.subr.mxu0 0.0
    %536 = vmatpush2.msra.mxu0 0.0
    %537 = vmatprep.subr.mxu0 0.0
    %538 = vmatpush2.msra.mxu0 0.0
    %539 = vmatprep.subr.mxu0 0.0
    %540 = vmatpush2.msra.mxu0 0.0
    %541 = vmatprep.subr.mxu0 0.0
    %542 = vmatpush2.msra.mxu0 0.0
    %543 = vmatprep.subr.mxu0 0.0
    %544 = vmatpush2.msra.mxu0 0.0
    %545 = vmatprep.subr.mxu0 0.0
    %546 = vmatpush2.msra.mxu0 0.0
    %547 = vmatprep.subr.mxu0 0.0
    %548 = vmatpush2.msra.mxu0 0.0
    %549 = vmatprep.subr.mxu0 0.0
    %550 = vmatpush2.msra.mxu0 0.0
    %551 = vmatprep.mubr.f32.mxu0 0.0
    %552 = vmatmul.mubr.f32.gmra.mxu0 %v440
    %v553 = vpop.f32.mrf.mxu0
    %v554 = vadd.f32 %v437, %v553
    %v555 = vpop.f32.mrf.mxu0
    %556 = vmatprep.mubr.f32.mxu0 0.0
    %557 = vmatmul.mubr.f32.gmra.mxu0 %v443
    %v558 = vpop.f32.mrf.mxu0
    %v559 = vadd.f32 %v437, %v558
    %v560 = vpop.f32.mrf.mxu0
    %561 = vmatprep.mubr.f32.mxu0 0.0
    %562 = vmatmul.mubr.f32.gmra.mxu0 %v446
    %v563 = vpop.f32.mrf.mxu0
    %v564 = vadd.f32 %v437, %v563
    %v565 = vpop.f32.mrf.mxu0
    %566 = vmatprep.mubr.f32.mxu0 0.0
    %567 = vmatmul.mubr.f32.gmra.mxu0 %v449
    %v568 = vpop.f32.mrf.mxu0
    %v569 = vadd.f32 %v437, %v568
    %v570 = vpop.f32.mrf.mxu0
    %571 = vmatprep.mubr.f32.mxu0 0.0
    %572 = vmatmul.mubr.f32.gmra.mxu0 %v452
    %v573 = vpop.f32.mrf.mxu0
    %v574 = vadd.f32 %v437, %v573
    %v575 = vpop.f32.mrf.mxu0
    %576 = vmatprep.mubr.f32.mxu0 0.0
    %577 = vmatmul.mubr.f32.gmra.mxu0 %v455
    %v578 = vpop.f32.mrf.mxu0
    %v579 = vadd.f32 %v437, %v578
    %v580 = vpop.f32.mrf.mxu0
    %581 = vmatprep.mubr.f32.mxu0 0.0
    %582 = vmatmul.mubr.f32.gmra.mxu0 %v458
    %v583 = vpop.f32.mrf.mxu0
    %v584 = vadd.f32 %v437, %v583
    %v585 = vpop.f32.mrf.mxu0
    %586 = vmatprep.mubr.f32.mxu0 0.0
    %587 = vmatmul.mubr.f32.gmra.mxu0 %v461
    %v588 = vpop.f32.mrf.mxu0
    %v589 = vadd.f32 %v437, %v588
    %v590 = vpop.f32.mrf.mxu0
    %591 = vmatprep.mubr.f32.mxu0 0.0
    %592 = vmatmul.mubr.f32.gmra.mxu0 %v464
    %v593 = vpop.f32.mrf.mxu0
    %v594 = vadd.f32 %v437, %v593
    %v595 = vpop.f32.mrf.mxu0
    %596 = vmatprep.mubr.f32.mxu0 0.0
    %597 = vmatmul.mubr.f32.gmra.mxu0 %v467
    %v598 = vpop.f32.mrf.mxu0
    %v599 = vadd.f32 %v437, %v598
    %v600 = vpop.f32.mrf.mxu0
    %601 = vmatprep.mubr.f32.mxu0 0.0
    %602 = vmatmul.mubr.f32.gmra.mxu0 %v470
    %v603 = vpop.f32.mrf.mxu0
    %v604 = vadd.f32 %v437, %v603
    %v605 = vpop.f32.mrf.mxu0
    %606 = vmatprep.mubr.f32.mxu0 0.0
    %607 = vmatmul.mubr.f32.gmra.mxu0 %v473
    %v608 = vpop.f32.mrf.mxu0
    %v609 = vadd.f32 %v437, %v608
    %v610 = vpop.f32.mrf.mxu0
    %611 = vmatprep.mubr.f32.mxu0 0.0
    %612 = vmatmul.mubr.f32.gmra.mxu0 %v476
    %v613 = vpop.f32.mrf.mxu0
    %v614 = vadd.f32 %v437, %v613
    %v615 = vpop.f32.mrf.mxu0
    %616 = vmatprep.mubr.f32.mxu0 0.0
    %617 = vmatmul.mubr.f32.gmra.mxu0 %v479
    %v618 = vpop.f32.mrf.mxu0
    %v619 = vadd.f32 %v437, %v618
    %v620 = vpop.f32.mrf.mxu0
    %621 = vmatprep.mubr.f32.mxu0 0.0
    %622 = vmatmul.mubr.f32.gmra.mxu0 %v482
    %v623 = vpop.f32.mrf.mxu0
    %v624 = vadd.f32 %v437, %v623
    %v625 = vpop.f32.mrf.mxu0
    %626 = vmatprep.mubr.f32.mxu0 0.0
    %627 = vmatmul.mubr.f32.gmra.mxu0 %v485
    %v628 = vpop.f32.mrf.mxu0
    %v629 = vadd.f32 %v437, %v628
    %v630 = vpop.f32.mrf.mxu0
    %631 = vdwg.mxu0
    %v632 = vld [vmem:[%s8] sm:$0xff]
    %v633 = vld [vmem:[%s8 + $0x8] sm:$0xff]
    %v634 = vld [vmem:[%s8 + $0x10] sm:$0xff]
    %v635 = vld [vmem:[%s8 + $0x18] sm:$0xff]
    %v636 = vld [vmem:[%s9] sm:$0x1]
    %v638 = vlaneseq
    %v639 = vshrl.u32 %v638, 7
    %v640 = vsub.s32 0, %v639
    %v641 = vrot.slane %v636, %v640
    %643 = vmatprep.subr.mxu0 0.0
    %644 = vmatpush1.msra.mxu0 0.0
    %645 = vmatprep.subr.mxu0 0.0
    %646 = vmatpush1.msra.mxu0 0.0
    %647 = vmatprep.subr.mxu0 0.0
    %648 = vmatpush1.msra.mxu0 0.0
    %649 = vmatprep.subr.mxu0 0.0
    %650 = vmatpush1.msra.mxu0 0.0
    %651 = vmatprep.subr.mxu0 0.0
    %652 = vmatpush1.msra.mxu0 0.0
    %653 = vmatprep.subr.mxu0 0.0
    %654 = vmatpush1.msra.mxu0 0.0
    %655 = vmatprep.subr.mxu0 0.0
    %656 = vmatpush1.msra.mxu0 0.0
    %657 = vmatprep.subr.mxu0 0.0
    %658 = vmatpush1.msra.mxu0 0.0
    %659 = vmatprep.subr.mxu0 0.0
    %660 = vmatpush1.msra.mxu0 0.0
    %661 = vmatprep.subr.mxu0 0.0
    %662 = vmatpush1.msra.mxu0 0.0
    %663 = vmatprep.subr.mxu0 0.0
    %664 = vmatpush1.msra.mxu0 0.0
    %665 = vmatprep.subr.mxu0 0.0
    %666 = vmatpush1.msra.mxu0 0.0
    %667 = vmatprep.subr.mxu0 0.0
    %668 = vmatpush1.msra.mxu0 %v635
    %669 = vmatprep.subr.mxu0 0.0
    %670 = vmatpush1.msra.mxu0 %v634
    %671 = vmatprep.subr.mxu0 0.0
    %672 = vmatpush1.msra.mxu0 %v633
    %673 = vmatprep.subr.mxu0 0.0
    %674 = vmatpush1.msra.mxu0 %v632
    %675 = vmatprep.subr.mxu0 0.0
    %676 = vmatpush2.msra.mxu0 0.0
    %677 = vmatprep.subr.mxu0 0.0
    %678 = vmatpush2.msra.mxu0 0.0
    %679 = vmatprep.subr.mxu0 0.0
    %680 = vmatpush2.msra.mxu0 0.0
    %681 = vmatprep.subr.mxu0 0.0
    %682 = vmatpush2.msra.mxu0 0.0
    %683 = vmatprep.subr.mxu0 0.0
    %684 = vmatpush2.msra.mxu0 0.0
    %685 = vmatprep.subr.mxu0 0.0
    %686 = vmatpush2.msra.mxu0 0.0
    %687 = vmatprep.subr.mxu0 0.0
    %688 = vmatpush2.msra.mxu0 0.0
    %689 = vmatprep.subr.mxu0 0.0
    %690 = vmatpush2.msra.mxu0 0.0
    %691 = vmatprep.subr.mxu0 0.0
    %692 = vmatpush2.msra.mxu0 0.0
    %693 = vmatprep.subr.mxu0 0.0
    %694 = vmatpush2.msra.mxu0 0.0
    %695 = vmatprep.subr.mxu0 0.0
    %696 = vmatpush2.msra.mxu0 0.0
    %697 = vmatprep.subr.mxu0 0.0
    %698 = vmatpush2.msra.mxu0 0.0
    %699 = vmatprep.subr.mxu0 0.0
    %700 = vmatpush2.msra.mxu0 0.0
    %701 = vmatprep.subr.mxu0 0.0
    %702 = vmatpush2.msra.mxu0 0.0
    %703 = vmatprep.subr.mxu0 0.0
    %704 = vmatpush2.msra.mxu0 0.0
    %705 = vmatprep.subr.mxu0 0.0
    %706 = vmatpush2.msra.mxu0 0.0
    %707 = vmatprep.mubr.f32.mxu0 0.0
    %708 = vmatmul.mubr.f32.gmra.mxu0 %v440
    %v709 = vpop.f32.mrf.mxu0
    %v710 = vadd.f32 %v641, %v709
    %v711 = vpop.f32.mrf.mxu0
    %712 = vmatprep.mubr.f32.mxu0 0.0
    %713 = vmatmul.mubr.f32.gmra.mxu0 %v443
    %v714 = vpop.f32.mrf.mxu0
    %v715 = vadd.f32 %v641, %v714
    %v716 = vpop.f32.mrf.mxu0
    %717 = vmatprep.mubr.f32.mxu0 0.0
    %718 = vmatmul.mubr.f32.gmra.mxu0 %v446
    %v719 = vpop.f32.mrf.mxu0
    %v720 = vadd.f32 %v641, %v719
    %v721 = vpop.f32.mrf.mxu0
    %722 = vmatprep.mubr.f32.mxu0 0.0
    %723 = vmatmul.mubr.f32.gmra.mxu0 %v449
    %v724 = vpop.f32.mrf.mxu0
    %v725 = vadd.f32 %v641, %v724
    %v726 = vpop.f32.mrf.mxu0
    %727 = vmatprep.mubr.f32.mxu0 0.0
    %728 = vmatmul.mubr.f32.gmra.mxu0 %v452
    %v729 = vpop.f32.mrf.mxu0
    %v730 = vadd.f32 %v641, %v729
    %v731 = vpop.f32.mrf.mxu0
    %732 = vmatprep.mubr.f32.mxu0 0.0
    %733 = vmatmul.mubr.f32.gmra.mxu0 %v455
    %v734 = vpop.f32.mrf.mxu0
    %v735 = vadd.f32 %v641, %v734
    %v736 = vpop.f32.mrf.mxu0
    %737 = vmatprep.mubr.f32.mxu0 0.0
    %738 = vmatmul.mubr.f32.gmra.mxu0 %v458
    %v739 = vpop.f32.mrf.mxu0
    %v740 = vadd.f32 %v641, %v739
    %v741 = vpop.f32.mrf.mxu0
    %742 = vmatprep.mubr.f32.mxu0 0.0
    %743 = vmatmul.mubr.f32.gmra.mxu0 %v461
    %v744 = vpop.f32.mrf.mxu0
    %v745 = vadd.f32 %v641, %v744
    %v746 = vpop.f32.mrf.mxu0
    %747 = vmatprep.mubr.f32.mxu0 0.0
    %748 = vmatmul.mubr.f32.gmra.mxu0 %v464
    %v749 = vpop.f32.mrf.mxu0
    %v750 = vadd.f32 %v641, %v749
    %v751 = vpop.f32.mrf.mxu0
    %752 = vmatprep.mubr.f32.mxu0 0.0
    %753 = vmatmul.mubr.f32.gmra.mxu0 %v467
    %v754 = vpop.f32.mrf.mxu0
    %v755 = vadd.f32 %v641, %v754
    %v756 = vpop.f32.mrf.mxu0
    %757 = vmatprep.mubr.f32.mxu0 0.0
    %758 = vmatmul.mubr.f32.gmra.mxu0 %v470
    %v759 = vpop.f32.mrf.mxu0
    %v760 = vadd.f32 %v641, %v759
    %v761 = vpop.f32.mrf.mxu0
    %762 = vmatprep.mubr.f32.mxu0 0.0
    %763 = vmatmul.mubr.f32.gmra.mxu0 %v473
    %v764 = vpop.f32.mrf.mxu0
    %v765 = vadd.f32 %v641, %v764
    %v766 = vpop.f32.mrf.mxu0
    %767 = vmatprep.mubr.f32.mxu0 0.0
    %768 = vmatmul.mubr.f32.gmra.mxu0 %v476
    %v769 = vpop.f32.mrf.mxu0
    %v770 = vadd.f32 %v641, %v769
    %v771 = vpop.f32.mrf.mxu0
    %772 = vmatprep.mubr.f32.mxu0 0.0
    %773 = vmatmul.mubr.f32.gmra.mxu0 %v479
    %v774 = vpop.f32.mrf.mxu0
    %v775 = vadd.f32 %v641, %v774
    %v776 = vpop.f32.mrf.mxu0
    %777 = vmatprep.mubr.f32.mxu0 0.0
    %778 = vmatmul.mubr.f32.gmra.mxu0 %v482
    %v779 = vpop.f32.mrf.mxu0
    %v780 = vadd.f32 %v641, %v779
    %v781 = vpop.f32.mrf.mxu0
    %782 = vmatprep.mubr.f32.mxu0 0.0
    %783 = vmatmul.mubr.f32.gmra.mxu0 %v485
    %v784 = vpop.f32.mrf.mxu0
    %v785 = vadd.f32 %v641, %v784
    %v786 = vpop.f32.mrf.mxu0
    %787 = vdwg.mxu0
    %v789 = vsel %vm64, %v425, 0
    %v792 = vsel %vm64, %v554, 0
    %v795 = vsel %vm64, %v559, 0
    %v798 = vsel %vm64, %v564, 0
    %v801 = vsel %vm64, %v569, 0
    %v804 = vsel %vm64, %v574, 0
    %v807 = vsel %vm64, %v579, 0
    %v810 = vsel %vm64, %v584, 0
    %v813 = vsel %vm64, %v589, 0
    %815 = vmatprep.subr.mxu0 0.0
    %816 = vmatpush1.xpose.msra.mxu0 0.0
    %817 = vmatprep.subr.mxu0 0.0
    %818 = vmatpush1.xpose.msra.mxu0 0.0
    %819 = vmatprep.subr.mxu0 0.0
    %820 = vmatpush1.xpose.msra.mxu0 0.0
    %821 = vmatprep.subr.mxu0 0.0
    %822 = vmatpush1.xpose.msra.mxu0 0.0
    %823 = vmatprep.subr.mxu0 0.0
    %824 = vmatpush1.xpose.msra.mxu0 0.0
    %825 = vmatprep.subr.mxu0 0.0
    %826 = vmatpush1.xpose.msra.mxu0 0.0
    %827 = vmatprep.subr.mxu0 0.0
    %828 = vmatpush1.xpose.msra.mxu0 0.0
    %829 = vmatprep.subr.mxu0 0.0
    %830 = vmatpush1.xpose.msra.mxu0 0.0
    %831 = vmatprep.subr.mxu0 0.0
    %832 = vmatpush1.xpose.msra.mxu0 %v813
    %833 = vmatprep.subr.mxu0 0.0
    %834 = vmatpush1.xpose.msra.mxu0 %v810
    %835 = vmatprep.subr.mxu0 0.0
    %836 = vmatpush1.xpose.msra.mxu0 %v807
    %837 = vmatprep.subr.mxu0 0.0
    %838 = vmatpush1.xpose.msra.mxu0 %v804
    %839 = vmatprep.subr.mxu0 0.0
    %840 = vmatpush1.xpose.msra.mxu0 %v801
    %841 = vmatprep.subr.mxu0 0.0
    %842 = vmatpush1.xpose.msra.mxu0 %v798
    %843 = vmatprep.subr.mxu0 0.0
    %844 = vmatpush1.xpose.msra.mxu0 %v795
    %845 = vmatprep.subr.mxu0 0.0
    %846 = vmatpush1.xpose.msra.mxu0 %v792
    %847 = vmatprep.subr.mxu0 0.0
    %848 = vmatpush2.xpose.msra.mxu0 0.0
    %849 = vmatprep.subr.mxu0 0.0
    %850 = vmatpush2.xpose.msra.mxu0 0.0
    %851 = vmatprep.subr.mxu0 0.0
    %852 = vmatpush2.xpose.msra.mxu0 0.0
    %853 = vmatprep.subr.mxu0 0.0
    %854 = vmatpush2.xpose.msra.mxu0 0.0
    %855 = vmatprep.subr.mxu0 0.0
    %856 = vmatpush2.xpose.msra.mxu0 0.0
    %857 = vmatprep.subr.mxu0 0.0
    %858 = vmatpush2.xpose.msra.mxu0 0.0
    %859 = vmatprep.subr.mxu0 0.0
    %860 = vmatpush2.xpose.msra.mxu0 0.0
    %861 = vmatprep.subr.mxu0 0.0
    %862 = vmatpush2.xpose.msra.mxu0 0.0
    %863 = vmatprep.subr.mxu0 0.0
    %864 = vmatpush2.xpose.msra.mxu0 0.0
    %865 = vmatprep.subr.mxu0 0.0
    %866 = vmatpush2.xpose.msra.mxu0 0.0
    %867 = vmatprep.subr.mxu0 0.0
    %868 = vmatpush2.xpose.msra.mxu0 0.0
    %869 = vmatprep.subr.mxu0 0.0
    %870 = vmatpush2.xpose.msra.mxu0 0.0
    %871 = vmatprep.subr.mxu0 0.0
    %872 = vmatpush2.xpose.msra.mxu0 0.0
    %873 = vmatprep.subr.mxu0 0.0
    %874 = vmatpush2.xpose.msra.mxu0 0.0
    %875 = vmatprep.subr.mxu0 0.0
    %876 = vmatpush2.xpose.msra.mxu0 0.0
    %877 = vmatprep.subr.mxu0 0.0
    %878 = vmatpush2.xpose.msra.mxu0 0.0
    %879 = vmatprep.mubr.f32.mxu0 0.0
    %880 = vmatmul.mubr.f32.gmra.mxu0 %v789
    %v881 = vpop.f32.mrf.mxu0
    %v882 = vadd.f32 0.0, %v881
    %v883 = vpop.f32.mrf.mxu0
    %884 = vdwg.mxu0
    %v886 = vsel %vm64, %v594, 0
    %v889 = vsel %vm64, %v599, 0
    %v892 = vsel %vm64, %v604, 0
    %v895 = vsel %vm64, %v609, 0
    %v898 = vsel %vm64, %v614, 0
    %v901 = vsel %vm64, %v619, 0
    %v904 = vsel %vm64, %v624, 0
    %v907 = vsel %vm64, %v629, 0
    %909 = vmatprep.subr.mxu0 0.0
    %910 = vmatpush1.xpose.msra.mxu0 0.0
    %911 = vmatprep.subr.mxu0 0.0
    %912 = vmatpush1.xpose.msra.mxu0 0.0
    %913 = vmatprep.subr.mxu0 0.0
    %914 = vmatpush1.xpose.msra.mxu0 0.0
    %915 = vmatprep.subr.mxu0 0.0
    %916 = vmatpush1.xpose.msra.mxu0 0.0
    %917 = vmatprep.subr.mxu0 0.0
    %918 = vmatpush1.xpose.msra.mxu0 0.0
    %919 = vmatprep.subr.mxu0 0.0
    %920 = vmatpush1.xpose.msra.mxu0 0.0
    %921 = vmatprep.subr.mxu0 0.0
    %922 = vmatpush1.xpose.msra.mxu0 0.0
    %923 = vmatprep.subr.mxu0 0.0
    %924 = vmatpush1.xpose.msra.mxu0 0.0
    %925 = vmatprep.subr.mxu0 0.0
    %926 = vmatpush1.xpose.msra.mxu0 %v907
    %927 = vmatprep.subr.mxu0 0.0
    %928 = vmatpush1.xpose.msra.mxu0 %v904
    %929 = vmatprep.subr.mxu0 0.0
    %930 = vmatpush1.xpose.msra.mxu0 %v901
    %931 = vmatprep.subr.mxu0 0.0
    %932 = vmatpush1.xpose.msra.mxu0 %v898
    %933 = vmatprep.subr.mxu0 0.0
    %934 = vmatpush1.xpose.msra.mxu0 %v895
    %935 = vmatprep.subr.mxu0 0.0
    %936 = vmatpush1.xpose.msra.mxu0 %v892
    %937 = vmatprep.subr.mxu0 0.0
    %938 = vmatpush1.xpose.msra.mxu0 %v889
    %939 = vmatprep.subr.mxu0 0.0
    %940 = vmatpush1.xpose.msra.mxu0 %v886
    %941 = vmatprep.subr.mxu0 0.0
    %942 = vmatpush2.xpose.msra.mxu0 0.0
    %943 = vmatprep.subr.mxu0 0.0
    %944 = vmatpush2.xpose.msra.mxu0 0.0
    %945 = vmatprep.subr.mxu0 0.0
    %946 = vmatpush2.xpose.msra.mxu0 0.0
    %947 = vmatprep.subr.mxu0 0.0
    %948 = vmatpush2.xpose.msra.mxu0 0.0
    %949 = vmatprep.subr.mxu0 0.0
    %950 = vmatpush2.xpose.msra.mxu0 0.0
    %951 = vmatprep.subr.mxu0 0.0
    %952 = vmatpush2.xpose.msra.mxu0 0.0
    %953 = vmatprep.subr.mxu0 0.0
    %954 = vmatpush2.xpose.msra.mxu0 0.0
    %955 = vmatprep.subr.mxu0 0.0
    %956 = vmatpush2.xpose.msra.mxu0 0.0
    %957 = vmatprep.subr.mxu0 0.0
    %958 = vmatpush2.xpose.msra.mxu0 0.0
    %959 = vmatprep.subr.mxu0 0.0
    %960 = vmatpush2.xpose.msra.mxu0 0.0
    %961 = vmatprep.subr.mxu0 0.0
    %962 = vmatpush2.xpose.msra.mxu0 0.0
    %963 = vmatprep.subr.mxu0 0.0
    %964 = vmatpush2.xpose.msra.mxu0 0.0
    %965 = vmatprep.subr.mxu0 0.0
    %966 = vmatpush2.xpose.msra.mxu0 0.0
    %967 = vmatprep.subr.mxu0 0.0
    %968 = vmatpush2.xpose.msra.mxu0 0.0
    %969 = vmatprep.subr.mxu0 0.0
    %970 = vmatpush2.xpose.msra.mxu0 0.0
    %971 = vmatprep.subr.mxu0 0.0
    %972 = vmatpush2.xpose.msra.mxu0 0.0
    %973 = vmatprep.mubr.f32.mxu0 0.0
    %974 = vmatmul.mubr.f32.gmra.mxu0 %v789
    %v975 = vpop.f32.mrf.mxu0
    %v976 = vadd.f32 0.0, %v975
    %v977 = vpop.f32.mrf.mxu0
    %978 = vdwg.mxu0
    %vm979 = vcmask 516096
    %v980 = vsel %vm979, %v882, -inf
    %981 = vmax.xlane.f32.xlu0 %v980
    %v982 = vpop.xlane.xlu0 %981
    %v983 = vsel %vm979, %v976, -inf
    %984 = vmax.xlane.f32.xlu0 %v983
    %v985 = vpop.xlane.xlu0 %984
    %v986 = vsub.f32 %v882, %v982
    %v987 = vsub.f32 %v976, %v985
    %v988 = vmul.f32 %v986, 1.442695
    %v989 = vpow.pop %v988
    %v990 = vmul.f32 %v987, 1.442695
    %v991 = vpow.pop %v990
    %v992 = vsel %vm979, %v989, 0.0
    %993 = vadd.xlane.f32.xlu0 %v992
    %v994 = vpop.xlane.xlu0 %993
    %v995 = vsel %vm979, %v991, 0.0
    %996 = vadd.xlane.f32.xlu0 %v995
    %v997 = vpop.xlane.xlu0 %996
    %v998 = vrcp.pop %v994
    %v999 = vmul.f32 %v989, %v998
    %v1000 = vrcp.pop %v997
    %v1001 = vmul.f32 %v991, %v1000
    %vm1002 = vcmask 523264
    %v1004 = vsel %vm1002, %v999, 0
    %1006 = vmatprep.subr.mxu0 0.0
    %1007 = vmatpush1.msra.mxu0 0.0
    %1008 = vmatprep.subr.mxu0 0.0
    %1009 = vmatpush1.msra.mxu0 0.0
    %1010 = vmatprep.subr.mxu0 0.0
    %1011 = vmatpush1.msra.mxu0 0.0
    %1012 = vmatprep.subr.mxu0 0.0
    %1013 = vmatpush1.msra.mxu0 0.0
    %1014 = vmatprep.subr.mxu0 0.0
    %1015 = vmatpush1.msra.mxu0 0.0
    %1016 = vmatprep.subr.mxu0 0.0
    %1017 = vmatpush1.msra.mxu0 0.0
    %1018 = vmatprep.subr.mxu0 0.0
    %1019 = vmatpush1.msra.mxu0 0.0
    %1020 = vmatprep.subr.mxu0 0.0
    %1021 = vmatpush1.msra.mxu0 0.0
    %1022 = vmatprep.subr.mxu0 0.0
    %1023 = vmatpush1.msra.mxu0 %v745
    %1024 = vmatprep.subr.mxu0 0.0
    %1025 = vmatpush1.msra.mxu0 %v740
    %1026 = vmatprep.subr.mxu0 0.0
    %1027 = vmatpush1.msra.mxu0 %v735
    %1028 = vmatprep.subr.mxu0 0.0
    %1029 = vmatpush1.msra.mxu0 %v730
    %1030 = vmatprep.subr.mxu0 0.0
    %1031 = vmatpush1.msra.mxu0 %v725
    %1032 = vmatprep.subr.mxu0 0.0
    %1033 = vmatpush1.msra.mxu0 %v720
    %1034 = vmatprep.subr.mxu0 0.0
    %1035 = vmatpush1.msra.mxu0 %v715
    %1036 = vmatprep.subr.mxu0 0.0
    %1037 = vmatpush1.msra.mxu0 %v710
    %1038 = vmatprep.subr.mxu0 0.0
    %1039 = vmatpush2.msra.mxu0 0.0
    %1040 = vmatprep.subr.mxu0 0.0
    %1041 = vmatpush2.msra.mxu0 0.0
    %1042 = vmatprep.subr.mxu0 0.0
    %1043 = vmatpush2.msra.mxu0 0.0
    %1044 = vmatprep.subr.mxu0 0.0
    %1045 = vmatpush2.msra.mxu0 0.0
    %1046 = vmatprep.subr.mxu0 0.0
    %1047 = vmatpush2.msra.mxu0 0.0
    %1048 = vmatprep.subr.mxu0 0.0
    %1049 = vmatpush2.msra.mxu0 0.0
    %1050 = vmatprep.subr.mxu0 0.0
    %1051 = vmatpush2.msra.mxu0 0.0
    %1052 = vmatprep.subr.mxu0 0.0
    %1053 = vmatpush2.msra.mxu0 0.0
    %1054 = vmatprep.subr.mxu0 0.0
    %1055 = vmatpush2.msra.mxu0 0.0
    %1056 = vmatprep.subr.mxu0 0.0
    %1057 = vmatpush2.msra.mxu0 0.0
    %1058 = vmatprep.subr.mxu0 0.0
    %1059 = vmatpush2.msra.mxu0 0.0
    %1060 = vmatprep.subr.mxu0 0.0
    %1061 = vmatpush2.msra.mxu0 0.0
    %1062 = vmatprep.subr.mxu0 0.0
    %1063 = vmatpush2.msra.mxu0 0.0
    %1064 = vmatprep.subr.mxu0 0.0
    %1065 = vmatpush2.msra.mxu0 0.0
    %1066 = vmatprep.subr.mxu0 0.0
    %1067 = vmatpush2.msra.mxu0 0.0
    %1068 = vmatprep.subr.mxu0 0.0
    %1069 = vmatpush2.msra.mxu0 0.0
    %1070 = vmatprep.mubr.f32.mxu0 0.0
    %1071 = vmatmul.mubr.f32.gmra.mxu0 %v1004
    %v1072 = vpop.f32.mrf.mxu0
    %v1073 = vadd.f32 0.0, %v1072
    %v1074 = vpop.f32.mrf.mxu0
    %1075 = vdwg.mxu0
    %v1077 = vsel %vm1002, %v1001, 0
    %1079 = vmatprep.subr.mxu0 0.0
    %1080 = vmatpush1.msra.mxu0 0.0
    %1081 = vmatprep.subr.mxu0 0.0
    %1082 = vmatpush1.msra.mxu0 0.0
    %1083 = vmatprep.subr.mxu0 0.0
    %1084 = vmatpush1.msra.mxu0 0.0
    %1085 = vmatprep.subr.mxu0 0.0
    %1086 = vmatpush1.msra.mxu0 0.0
    %1087 = vmatprep.subr.mxu0 0.0
    %1088 = vmatpush1.msra.mxu0 0.0
    %1089 = vmatprep.subr.mxu0 0.0
    %1090 = vmatpush1.msra.mxu0 0.0
    %1091 = vmatprep.subr.mxu0 0.0
    %1092 = vmatpush1.msra.mxu0 0.0
    %1093 = vmatprep.subr.mxu0 0.0
    %1094 = vmatpush1.msra.mxu0 0.0
    %1095 = vmatprep.subr.mxu0 0.0
    %1096 = vmatpush1.msra.mxu0 %v785
    %1097 = vmatprep.subr.mxu0 0.0
    %1098 = vmatpush1.msra.mxu0 %v780
    %1099 = vmatprep.subr.mxu0 0.0
    %1100 = vmatpush1.msra.mxu0 %v775
    %1101 = vmatprep.subr.mxu0 0.0
    %1102 = vmatpush1.msra.mxu0 %v770
    %1103 = vmatprep.subr.mxu0 0.0
    %1104 = vmatpush1.msra.mxu0 %v765
    %1105 = vmatprep.subr.mxu0 0.0
    %1106 = vmatpush1.msra.mxu0 %v760
    %1107 = vmatprep.subr.mxu0 0.0
    %1108 = vmatpush1.msra.mxu0 %v755
    %1109 = vmatprep.subr.mxu0 0.0
    %1110 = vmatpush1.msra.mxu0 %v750
    %1111 = vmatprep.subr.mxu0 0.0
    %1112 = vmatpush2.msra.mxu0 0.0
    %1113 = vmatprep.subr.mxu0 0.0
    %1114 = vmatpush2.msra.mxu0 0.0
    %1115 = vmatprep.subr.mxu0 0.0
    %1116 = vmatpush2.msra.mxu0 0.0
    %1117 = vmatprep.subr.mxu0 0.0
    %1118 = vmatpush2.msra.mxu0 0.0
    %1119 = vmatprep.subr.mxu0 0.0
    %1120 = vmatpush2.msra.mxu0 0.0
    %1121 = vmatprep.subr.mxu0 0.0
    %1122 = vmatpush2.msra.mxu0 0.0
    %1123 = vmatprep.subr.mxu0 0.0
    %1124 = vmatpush2.msra.mxu0 0.0
    %1125 = vmatprep.subr.mxu0 0.0
    %1126 = vmatpush2.msra.mxu0 0.0
    %1127 = vmatprep.subr.mxu0 0.0
    %1128 = vmatpush2.msra.mxu0 0.0
    %1129 = vmatprep.subr.mxu0 0.0
    %1130 = vmatpush2.msra.mxu0 0.0
    %1131 = vmatprep.subr.mxu0 0.0
    %1132 = vmatpush2.msra.mxu0 0.0
    %1133 = vmatprep.subr.mxu0 0.0
    %1134 = vmatpush2.msra.mxu0 0.0
    %1135 = vmatprep.subr.mxu0 0.0
    %1136 = vmatpush2.msra.mxu0 0.0
    %1137 = vmatprep.subr.mxu0 0.0
    %1138 = vmatpush2.msra.mxu0 0.0
    %1139 = vmatprep.subr.mxu0 0.0
    %1140 = vmatpush2.msra.mxu0 0.0
    %1141 = vmatprep.subr.mxu0 0.0
    %1142 = vmatpush2.msra.mxu0 0.0
    %1143 = vmatprep.mubr.f32.mxu0 0.0
    %1144 = vmatmul.mubr.f32.gmra.mxu0 %v1077
    %v1145 = vpop.f32.mrf.mxu0
    %v1146 = vadd.f32 0.0, %v1145
    %v1147 = vpop.f32.mrf.mxu0
    %1148 = vdwg.mxu0
    %v1149 = vld [vmem:[%s10] sm:$0xff]
    %v1150 = vld [vmem:[%s10 + $0x8] sm:$0xff]
    %v1151 = vld [vmem:[%s10 + $0x10] sm:$0xff]
    %v1152 = vld [vmem:[%s10 + $0x18] sm:$0xff]
    %v1153 = vld [vmem:[%s11] sm:$0x1]
    %v1155 = vlaneseq
    %v1156 = vshrl.u32 %v1155, 7
    %v1157 = vsub.s32 0, %v1156
    %v1158 = vrot.slane %v1153, %v1157
    %v1162 = vrot.slane %v1146, 7
    %vm1163 = vcmask 1041409
    %v1164 = vsel %vm1163, %v1162, %v1073
    %v1165 = vsel %vm64, %v1164, 0
    %1167 = vmatprep.subr.mxu0 0.0
    %1168 = vmatpush1.msra.mxu0 0.0
    %1169 = vmatprep.subr.mxu0 0.0
    %1170 = vmatpush1.msra.mxu0 0.0
    %1171 = vmatprep.subr.mxu0 0.0
    %1172 = vmatpush1.msra.mxu0 0.0
    %1173 = vmatprep.subr.mxu0 0.0
    %1174 = vmatpush1.msra.mxu0 0.0
    %1175 = vmatprep.subr.mxu0 0.0
    %1176 = vmatpush1.msra.mxu0 0.0
    %1177 = vmatprep.subr.mxu0 0.0
    %1178 = vmatpush1.msra.mxu0 0.0
    %1179 = vmatprep.subr.mxu0 0.0
    %1180 = vmatpush1.msra.mxu0 0.0
    %1181 = vmatprep.subr.mxu0 0.0
    %1182 = vmatpush1.msra.mxu0 0.0
    %1183 = vmatprep.subr.mxu0 0.0
    %1184 = vmatpush1.msra.mxu0 0.0
    %1185 = vmatprep.subr.mxu0 0.0
    %1186 = vmatpush1.msra.mxu0 0.0
    %1187 = vmatprep.subr.mxu0 0.0
    %1188 = vmatpush1.msra.mxu0 0.0
    %1189 = vmatprep.subr.mxu0 0.0
    %1190 = vmatpush1.msra.mxu0 0.0
    %1191 = vmatprep.subr.mxu0 0.0
    %1192 = vmatpush1.msra.mxu0 %v1152
    %1193 = vmatprep.subr.mxu0 0.0
    %1194 = vmatpush1.msra.mxu0 %v1151
    %1195 = vmatprep.subr.mxu0 0.0
    %1196 = vmatpush1.msra.mxu0 %v1150
    %1197 = vmatprep.subr.mxu0 0.0
    %1198 = vmatpush1.msra.mxu0 %v1149
    %1199 = vmatprep.subr.mxu0 0.0
    %1200 = vmatpush2.msra.mxu0 0.0
    %1201 = vmatprep.subr.mxu0 0.0
    %1202 = vmatpush2.msra.mxu0 0.0
    %1203 = vmatprep.subr.mxu0 0.0
    %1204 = vmatpush2.msra.mxu0 0.0
    %1205 = vmatprep.subr.mxu0 0.0
    %1206 = vmatpush2.msra.mxu0 0.0
    %1207 = vmatprep.subr.mxu0 0.0
    %1208 = vmatpush2.msra.mxu0 0.0
    %1209 = vmatprep.subr.mxu0 0.0
    %1210 = vmatpush2.msra.mxu0 0.0
    %1211 = vmatprep.subr.mxu0 0.0
    %1212 = vmatpush2.msra.mxu0 0.0
    %1213 = vmatprep.subr.mxu0 0.0
    %1214 = vmatpush2.msra.mxu0 0.0
    %1215 = vmatprep.subr.mxu0 0.0
    %1216 = vmatpush2.msra.mxu0 0.0
    %1217 = vmatprep.subr.mxu0 0.0
    %1218 = vmatpush2.msra.mxu0 0.0
    %1219 = vmatprep.subr.mxu0 0.0
    %1220 = vmatpush2.msra.mxu0 0.0
    %1221 = vmatprep.subr.mxu0 0.0
    %1222 = vmatpush2.msra.mxu0 0.0
    %1223 = vmatprep.subr.mxu0 0.0
    %1224 = vmatpush2.msra.mxu0 0.0
    %1225 = vmatprep.subr.mxu0 0.0
    %1226 = vmatpush2.msra.mxu0 0.0
    %1227 = vmatprep.subr.mxu0 0.0
    %1228 = vmatpush2.msra.mxu0 0.0
    %1229 = vmatprep.subr.mxu0 0.0
    %1230 = vmatpush2.msra.mxu0 0.0
    %1231 = vmatprep.mubr.f32.mxu0 0.0
    %1232 = vmatmul.mubr.f32.gmra.mxu0 %v1165
    %v1233 = vpop.f32.mrf.mxu0
    %v1234 = vadd.f32 %v1158, %v1233
    %v1235 = vpop.f32.mrf.mxu0
    %1236 = vdwg.mxu0
    %v1238 = vrot.slane %v1234, 1
    %v1241 = vadd.f32 %v108, %v1234
    %v1242 = vadd.f32 %v109, %v1238
    %v1243 = vld [vmem:[%s12] sm:$0x1]
    %v1244 = vld [vmem:[%s13] sm:$0x1]
    %v1247 = vrot.slane %v1242, 7
    %v1248 = vsel %vm1163, %v1247, %v1241
    %vm1250 = vcmask 254976
    %v1251 = vsel %vm1250, %v1248, 0.0
    %1252 = vadd.xlane.f32.xlu0 %v1251
    %v1253 = vpop.xlane.xlu0 %1252
    %v1254 = vmul.f32 %v1253, %v144
    %v1256 = vrot.slane %v1254, 1
    %v1259 = vsub.f32 %v1241, %v1254
    %v1260 = vsub.f32 %v1242, %v1256
    %v1261 = vmul.f32 %v1259, %v1259
    %v1262 = vmul.f32 %v1260, %v1260
    %v1265 = vrot.slane %v1262, 7
    %v1266 = vsel %vm1163, %v1265, %v1261
    %v1268 = vsel %vm1250, %v1266, 0.0
    %1269 = vadd.xlane.f32.xlu0 %v1268
    %v1270 = vpop.xlane.xlu0 %1269
    %v1271 = vmul.f32 %v1270, %v144
    %v1272 = vadd.f32 %v1271, 1e-05
    %v1273 = vrsqrt.pop %v1272
    %v1275 = vrot.slane %v1273, 1
    %v1278 = vmul.f32 %v1259, %v1273
    %v1279 = vmul.f32 %v1260, %v1275
    %v1281 = vlaneseq
    %v1282 = vshrl.u32 %v1281, 7
    %v1283 = vsub.s32 0, %v1282
    %v1284 = vrot.slane %v1243, %v1283
    %v1286 = vmul.f32 %v1278, %v1284
    %v1287 = vmul.f32 %v1279, %v1284
    %v1289 = vlaneseq
    %v1290 = vshrl.u32 %v1289, 7
    %v1291 = vsub.s32 0, %v1290
    %v1292 = vrot.slane %v1244, %v1291
    %v1294 = vadd.f32 %v1286, %v1292
    %v1295 = vadd.f32 %v1287, %v1292
    %v1296 = vmul.f32 %v1294, 0.5
    %v1297 = vmul.f32 %v1295, 0.5
    %v1298 = vmul.f32 %v1294, 0.70710677
    %v1299 = vmul.f32 %v1295, 0.70710677
    %v1300 = vand.u32 2147483647, %v1298
    %v1301 = vand.u32 2147483647, %v1299
    %v1302 = vmul.f32 %v1300, 0.3275911
    %v1303 = vmul.f32 %v1301, 0.3275911
    %v1304 = vadd.f32 %v1302, 1.0
    %v1305 = vadd.f32 %v1303, 1.0
    %v1306 = vrcp.pop %v1304
    %v1307 = vmul.f32 1.0, %v1306
    %v1308 = vrcp.pop %v1305
    %v1309 = vmul.f32 1.0, %v1308
    %v1310 = vmul.f32 %v1307, 1.0614054
    %v1311 = vmul.f32 %v1309, 1.0614054
    %v1312 = vadd.f32 %v1310, -1.4531521
    %v1313 = vadd.f32 %v1311, -1.4531521
    %v1314 = vmul.f32 %v1312, %v1307
    %v1315 = vmul.f32 %v1313, %v1309
    %v1316 = vadd.f32 %v1314, 1.4214138
    %v1317 = vadd.f32 %v1315, 1.4214138
    %v1318 = vmul.f32 %v1316, %v1307
    %v1319 = vmul.f32 %v1317, %v1309
    %v1320 = vadd.f32 %v1318, -0.28449672
    %v1321 = vadd.f32 %v1319, -0.28449672
    %v1322 = vmul.f32 %v1320, %v1307
    %v1323 = vmul.f32 %v1321, %v1309
    %v1324 = vadd.f32 %v1322, 0.2548296
    %v1325 = vadd.f32 %v1323, 0.2548296
    %v1326 = vmul.f32 %v1324, %v1307
    %v1327 = vmul.f32 %v1325, %v1309
    %v1328 = vsub.f32 0.0, %v1300
    %v1329 = vsub.f32 0.0, %v1301
    %v1330 = vmul.f32 %v1328, %v1300
    %v1331 = vmul.f32 %v1329, %v1301
    %v1332 = vmul.f32 %v1330, 1.442695
    %v1333 = vpow.pop %v1332
    %v1334 = vmul.f32 %v1331, 1.442695
    %v1335 = vpow.pop %v1334
    %v1336 = vmul.f32 %v1326, %v1333
    %v1337 = vmul.f32 %v1327, %v1335
    %v1338 = vsub.f32 1.0, %v1336
    %v1339 = vsub.f32 1.0, %v1337
    %vm1340 = vcmp.ge.f32.partialorder %v1298, 0.0
    %vm1341 = vcmp.ge.f32.partialorder %v1299, 0.0
    %v1342 = vsub.f32 0.0, %v1338
    %v1343 = vsub.f32 0.0, %v1339
    %v1344 = vsel %vm1340, %v1338, %v1342
    %v1345 = vsel %vm1341, %v1339, %v1343
    %v1346 = vadd.f32 %v1344, 1.0
    %v1347 = vadd.f32 %v1345, 1.0
    %v1348 = vmul.f32 %v1296, %v1346
    %v1349 = vmul.f32 %v1297, %v1347
    %v1352 = vrot.slane %v1349, 7
    %v1353 = vsel %vm1163, %v1352, %v1348
    %1355 = vst.msk [vmem:[#allocation2] sm:$0x3] %vm1250, %v1353
    // Predicated region
    $region58: #{tpu_custom_call.1} parent=1 // pred_check
      _
    $region59: #{tpu_custom_call.1} parent=1 // pred_check_branch
      %1357 = sbr.rel (0) target = $region61
    $region60: #{tpu_custom_call.1} parent=1 // pred_region
      %s1359 = ssub.s32 32, 32
      %1360 = vsyncadd [#allocation3], %s1359
      %s1362 = sshll.u32 [#allocation2], 4
      %s1363 = int_to_ptr.vmem [resolvable:$true] %s1362
      %1365 = dma.vmem_to_hbm [thread:$0]  %s1363, 32, %s14, [#allocation3]
    $region61: #{tpu_custom_call.1} parent=1 // pred_fallthru
      _
    // Predicated region
    $region62: #{tpu_custom_call.1} parent=1 // pred_check
      _
    $region63: #{tpu_custom_call.1} parent=1 // pred_check_branch
      %1367 = sbr.rel (0) target = $region65
    $region64: #{tpu_custom_call.1} parent=1 // pred_region
      %1368 = dma.done [#allocation3], 32
    $region65: #{tpu_custom_call.1} parent=1 // pred_fallthru
      _
    %1369 = vsyncpa [#allocation3], 1

</llo_original>
